<compile_context>
chip_gen: v7x
topology: tpu7x:2x2x1
jax: 0.10.0
libtpu: 0.0.40
codegen_flags: <defaults>
</compile_context>

<pallas_src>
import jax
import jax.numpy as jnp
from jax import lax
from jax.experimental import pallas as pl
from jax.experimental.pallas import tpu as pltpu

VOCAB = 10
EMBED = 32
HID = 64          # nn.RNN(64, 64, 2)
OUT = 10          # nn.Linear(64, 10)
MAX_BATCH_TILE = 128


def rnn_recurrence_kernel(xp_ref, whh0_ref, wih1_ref, whh1_ref, b1_ref, h1seq_ref):
    """Serial part of the 2-layer Elman RNN (tanh).

    xp_ref:    (T, BT, 64) precomputed x_t @ Wih0^T + b_ih0 + b_hh0 (time-major)
    whh0_ref:  (64, 64)    Whh0^T
    wih1_ref:  (64, 64)    Wih1^T
    whh1_ref:  (64, 64)    Whh1^T
    b1_ref:    (1, 64)     b_ih1 + b_hh1
    h1seq_ref: (T, BT, 64) layer-1 hidden states (kernel output)
    """
    T, BT, _ = xp_ref.shape

    # Hoisted out of the loop (JAX does not CSE broadcast_in_dim per iteration).
    b1b = jnp.broadcast_to(b1_ref[...], (BT, HID))
    h_init = jnp.zeros((BT, HID), jnp.float32)

    def step(t, carry):
        h0_prev, h1_prev = carry
        # Early-issue: the hh half of layer 1 depends only on h1_{t-1}, so it
        # overlaps with the layer-0 recurrent matmul of step t instead of
        # waiting behind a lane concat + K=128 contraction.
        hh1 = jnp.dot(h1_prev, whh1_ref[...], preferred_element_type=jnp.float32)
        # Layer 0: input projection + biases were hoisted to the wrapper; only
        # the recurrent matmul remains on the serial dependency chain.
        h0 = jnp.tanh(
            xp_ref[t]
            + jnp.dot(h0_prev, whh0_ref[...], preferred_element_type=jnp.float32))
        # Layer 1: critical path is just one K=64 dot + add + tanh.
        h1 = jnp.tanh(
            jnp.dot(h0, wih1_ref[...], preferred_element_type=jnp.float32)
            + hh1 + b1b)
        h1seq_ref[t] = h1                                        # 64-lane-wide store
        return (h0, h1)

    # Small static T: full unroll so the scheduler overlaps the independent
    # layer-0(t+1) / layer-1(t) chains.  Cap the unroll for long T to bound
    # instruction-stream size and vreg live ranges.
    unroll = True if T <= 32 else 8
    lax.fori_loop(0, T, step, (h_init, h_init), unroll=unroll)


@jax.jit
def my_pt_rnn_forward(num1, num2, params):
    """Forward pass of myPTRNNModel (choice='rnn'), batch_first semantics."""
    B, T = num1.shape

    # --- Hoisted non-recurrent work #1: the input projection of an embedding
    # lookup is itself a lookup in a projected 10-row table.  Two small
    # (10,32)@(32,64) matmuls replace the concat + (B*T,64)@(64,64) matmul.
    emb = params["embed"]                                       # (10, 32)
    wih0_t = params["w_ih_l0"].T                                # (64_in, 64_out)
    p1 = emb @ wih0_t[:EMBED, :]                                # (10, 64)
    p2 = emb @ wih0_t[EMBED:, :]                                # (10, 64)
    b0 = params["b_ih_l0"] + params["b_hh_l0"]                  # (64,)

    # Build xproj directly time-major: (T, B, 64).  No activation transposes.
    xp_tm = jnp.take(p1, num1.T, axis=0) + jnp.take(p2, num2.T, axis=0) + b0

    # Pad batch to a sublane multiple (8); tile at 128 rows per grid step for
    # larger batches so batch tiles shard across TensorCores.
    if B <= MAX_BATCH_TILE:
        BT = -(-B // 8) * 8
    else:
        BT = MAX_BATCH_TILE
    Bp = -(-B // BT) * BT
    if Bp != B:
        xp_tm = jnp.pad(xp_tm, ((0, 0), (0, Bp - B), (0, 0)))

    # Recurrent weights, pre-transposed for x @ W.  Layer-1 ih/hh are kept
    # separate so the kernel can early-issue the hh dot off the critical path.
    whh0_t = params["w_hh_l0"].T                                # (64, 64)
    wih1_t = params["w_ih_l1"].T                                # (64, 64)
    whh1_t = params["w_hh_l1"].T                                # (64, 64)
    b1 = (params["b_ih_l1"] + params["b_hh_l1"]).reshape(1, HID)

    nb = Bp // BT
    # TODO(synk): on v7x, when nb == 1 and B >= 32, split the batch into >=2
    # tiles and use pltpu.CORE_PARALLEL to engage the second TensorCore; for
    # long T, tile T with a second ("arbitrary") axis to stay in 64 MiB VMEM.
    h1_tm = pl.pallas_call(
        rnn_recurrence_kernel,
        out_shape=jax.ShapeDtypeStruct((T, Bp, HID), jnp.float32),
        grid=(nb,),
        in_specs=[
            pl.BlockSpec((T, BT, HID), lambda b: (0, b, 0)),     # xproj, batch-tiled
            pl.BlockSpec((HID, HID), lambda b: (0, 0)),          # Whh0^T
            pl.BlockSpec((HID, HID), lambda b: (0, 0)),          # Wih1^T
            pl.BlockSpec((HID, HID), lambda b: (0, 0)),          # Whh1^T
            pl.BlockSpec((1, HID), lambda b: (0, 0)),            # layer-1 bias
        ],
        out_specs=pl.BlockSpec((T, BT, HID), lambda b: (0, b, 0)),
        compiler_params=pltpu.CompilerParams(
            dimension_semantics=("parallel",)),
    )(xp_tm, whh0_t, wih1_t, whh1_t, b1)

    # --- Hoisted non-recurrent work #2: dense head consumes the time-major
    # kernel output directly (no transpose) and emits (B, T, 10).
    logits = jnp.einsum("tbh,ho->bto", h1_tm[:, :B, :],
                        params["dense_w"].T) + params["dense_b"]
    return logits                                                # (B, T, 10)


def init_params(key):
    """Deterministic init mirroring the PyTorch module's parameter shapes."""
    ks = jax.random.split(key, 11)
    bound = 1.0 / jnp.sqrt(jnp.float32(HID))
    u = lambda k, shape: jax.random.uniform(k, shape, jnp.float32, -bound, bound)
    return {
        "embed":   jax.random.normal(ks[0], (VOCAB, EMBED), jnp.float32),
        "w_ih_l0": u(ks[1], (HID, HID)),
        "w_hh_l0": u(ks[2], (HID, HID)),
        "b_ih_l0": u(ks[3], (HID,)),
        "b_hh_l0": u(ks[4], (HID,)),
        "w_ih_l1": u(ks[5], (HID, HID)),
        "w_hh_l1": u(ks[6], (HID, HID)),
        "b_ih_l1": u(ks[7], (HID,)),
        "b_hh_l1": u(ks[8], (HID,)),
        "dense_w": u(ks[9], (OUT, HID)),
        "dense_b": u(ks[10], (OUT,)),
    }


def reference_forward(num1, num2, params):
    """Pure-JAX reference reproducing PyTorch nn.RNN(batch_first) semantics."""
    emb = params["embed"]
    combined = jnp.concatenate(
        [jnp.take(emb, num1, axis=0), jnp.take(emb, num2, axis=0)], axis=2)
    B, T, _ = combined.shape
    x_tm = jnp.transpose(combined, (1, 0, 2))

    def layer(x_seq, wih, whh, bih, bhh):
        def step(h, x_t):
            h_new = jnp.tanh(x_t @ wih.T + bih + h @ whh.T + bhh)
            return h_new, h_new
        _, ys = lax.scan(step, jnp.zeros((B, HID), jnp.float32), x_seq)
        return ys

    h_l0 = layer(x_tm, params["w_ih_l0"], params["w_hh_l0"],
                 params["b_ih_l0"], params["b_hh_l0"])
    h_l1 = layer(h_l0, params["w_ih_l1"], params["w_hh_l1"],
                 params["b_ih_l1"], params["b_hh_l1"])
    logits_tm = h_l1 @ params["dense_w"].T + params["dense_b"]
    return jnp.transpose(logits_tm, (1, 0, 2))


if __name__ == "__main__":
    key = jax.random.PRNGKey(0)
    kp, k1, k2 = jax.random.split(key, 3)
    params = init_params(kp)

    B, T = 2, 8
    num1 = jax.random.randint(k1, (B, T), 0, VOCAB, dtype=jnp.int32)
    num2 = jax.random.randint(k2, (B, T), 0, VOCAB, dtype=jnp.int32)

    logits = my_pt_rnn_forward(num1, num2, params)
    jax.block_until_ready(logits)

    assert logits.shape == (B, T, OUT), logits.shape
    ref = reference_forward(num1, num2, params)
    assert jnp.allclose(logits, ref, atol=1e-5, rtol=1e-5), (
        float(jnp.max(jnp.abs(logits - ref))))

    print("KERNEL_OK")
</pallas_src>

<mosaic_0001>
module attributes {stable_mosaic.version = 11 : i64} {
  func.func @rnn_recurrence_kernel(%arg0: i32, %arg1: memref<8x8x64xf32, #tpu.memory_space<vmem>>, %arg2: memref<64x64xf32, #tpu.memory_space<vmem>>, %arg3: memref<64x64xf32, #tpu.memory_space<vmem>>, %arg4: memref<64x64xf32, #tpu.memory_space<vmem>>, %arg5: memref<1x64xf32, #tpu.memory_space<vmem>>, %arg6: memref<8x8x64xf32, #tpu.memory_space<vmem>>) attributes {dimension_semantics = [#tpu.dimension_semantics<parallel>], iteration_bounds = array<i64: 1>, scalar_prefetch = 0 : i64, scratch_operands = 0 : i64, tpu.core_type = #tpu.core_type<tc>, window_params = [{transform_indices = @transform_0, window_bounds = array<i64: 8, 8, 64>}, {pipeline_mode = #tpu.pipeline_mode<synchronous>, transform_indices = @transform_1, window_bounds = array<i64: 64, 64>}, {pipeline_mode = #tpu.pipeline_mode<synchronous>, transform_indices = @transform_2, window_bounds = array<i64: 64, 64>}, {pipeline_mode = #tpu.pipeline_mode<synchronous>, transform_indices = @transform_3, window_bounds = array<i64: 64, 64>}, {pipeline_mode = #tpu.pipeline_mode<synchronous>, transform_indices = @transform_4, window_bounds = array<i64: 1, 64>}, {transform_indices = @transform_5, window_bounds = array<i64: 8, 8, 64>}]} {
    %c0 = arith.constant 0 : index
    %c0_0 = arith.constant 0 : index
    %0 = vector.load %arg5[%c0, %c0_0] : memref<1x64xf32, #tpu.memory_space<vmem>>, vector<1x64xf32>
    %1 = vector.shape_cast %0 : vector<1x64xf32> to vector<1x64xf32>
    %2 = vector.broadcast %1 : vector<1x64xf32> to vector<8x64xf32>
    %cst = arith.constant 0.000000e+00 : f32
    %3 = vector.broadcast %cst : f32 to vector<8x64xf32>
    %c0_i32 = arith.constant 0 : i32
    %c0_1 = arith.constant 0 : index
    %c0_2 = arith.constant 0 : index
    %4 = vector.load %arg4[%c0_1, %c0_2] : memref<64x64xf32, #tpu.memory_space<vmem>>, vector<64x64xf32>
    %cst_3 = arith.constant dense<0.000000e+00> : vector<8x64xf32>
    %5 = tpu.matmul %3, %4, %cst_3 {dimension_numbers = #tpu.dot_dimension_numbers<[1], [0], [0], [1], [0, 0, 1, 1], [], []>} : vector<8x64xf32>, vector<64x64xf32>, vector<8x64xf32> -> vector<8x64xf32>
    %6 = arith.index_cast %c0_i32 : i32 to index
    %c0_4 = arith.constant 0 : index
    %c0_5 = arith.constant 0 : index
    %7 = vector.load %arg1[%6, %c0_4, %c0_5] : memref<8x8x64xf32, #tpu.memory_space<vmem>>, vector<1x8x64xf32>
    %8 = vector.shape_cast %7 : vector<1x8x64xf32> to vector<8x64xf32>
    %c0_6 = arith.constant 0 : index
    %c0_7 = arith.constant 0 : index
    %9 = vector.load %arg2[%c0_6, %c0_7] : memref<64x64xf32, #tpu.memory_space<vmem>>, vector<64x64xf32>
    %cst_8 = arith.constant dense<0.000000e+00> : vector<8x64xf32>
    %10 = tpu.matmul %3, %9, %cst_8 {dimension_numbers = #tpu.dot_dimension_numbers<[1], [0], [0], [1], [0, 0, 1, 1], [], []>} : vector<8x64xf32>, vector<64x64xf32>, vector<8x64xf32> -> vector<8x64xf32>
    %11 = arith.addf %8, %10 : vector<8x64xf32>
    %12 = math.tanh %11 : vector<8x64xf32>
    %c0_9 = arith.constant 0 : index
    %c0_10 = arith.constant 0 : index
    %13 = vector.load %arg3[%c0_9, %c0_10] : memref<64x64xf32, #tpu.memory_space<vmem>>, vector<64x64xf32>
    %cst_11 = arith.constant dense<0.000000e+00> : vector<8x64xf32>
    %14 = tpu.matmul %12, %13, %cst_11 {dimension_numbers = #tpu.dot_dimension_numbers<[1], [0], [0], [1], [0, 0, 1, 1], [], []>} : vector<8x64xf32>, vector<64x64xf32>, vector<8x64xf32> -> vector<8x64xf32>
    %15 = arith.addf %14, %5 : vector<8x64xf32>
    %16 = arith.addf %15, %2 : vector<8x64xf32>
    %17 = math.tanh %16 : vector<8x64xf32>
    %18 = arith.index_cast %c0_i32 : i32 to index
    %c0_12 = arith.constant 0 : index
    %c0_13 = arith.constant 0 : index
    %19 = vector.load %arg6[%18, %c0_12, %c0_13] : memref<8x8x64xf32, #tpu.memory_space<vmem>>, vector<1x8x64xf32>
    %20 = vector.shape_cast %19 : vector<1x8x64xf32> to vector<8x64xf32>
    %21 = vector.shape_cast %17 : vector<8x64xf32> to vector<1x8x64xf32>
    tpu.vector_store %arg6[%18, %c0_12, %c0_13], %21 {strides = array<i32>} : memref<8x8x64xf32, #tpu.memory_space<vmem>>, vector<1x8x64xf32>,
    %c1_i32 = arith.constant 1 : i32
    %c0_14 = arith.constant 0 : index
    %c0_15 = arith.constant 0 : index
    %22 = vector.load %arg4[%c0_14, %c0_15] : memref<64x64xf32, #tpu.memory_space<vmem>>, vector<64x64xf32>
    %cst_16 = arith.constant dense<0.000000e+00> : vector<8x64xf32>
    %23 = tpu.matmul %17, %22, %cst_16 {dimension_numbers = #tpu.dot_dimension_numbers<[1], [0], [0], [1], [0, 0, 1, 1], [], []>} : vector<8x64xf32>, vector<64x64xf32>, vector<8x64xf32> -> vector<8x64xf32>
    %24 = arith.index_cast %c1_i32 : i32 to index
    %c0_17 = arith.constant 0 : index
    %c0_18 = arith.constant 0 : index
    %25 = vector.load %arg1[%24, %c0_17, %c0_18] : memref<8x8x64xf32, #tpu.memory_space<vmem>>, vector<1x8x64xf32>
    %26 = vector.shape_cast %25 : vector<1x8x64xf32> to vector<8x64xf32>
    %c0_19 = arith.constant 0 : index
    %c0_20 = arith.constant 0 : index
    %27 = vector.load %arg2[%c0_19, %c0_20] : memref<64x64xf32, #tpu.memory_space<vmem>>, vector<64x64xf32>
    %cst_21 = arith.constant dense<0.000000e+00> : vector<8x64xf32>
    %28 = tpu.matmul %12, %27, %cst_21 {dimension_numbers = #tpu.dot_dimension_numbers<[1], [0], [0], [1], [0, 0, 1, 1], [], []>} : vector<8x64xf32>, vector<64x64xf32>, vector<8x64xf32> -> vector<8x64xf32>
    %29 = arith.addf %26, %28 : vector<8x64xf32>
    %30 = math.tanh %29 : vector<8x64xf32>
    %c0_22 = arith.constant 0 : index
    %c0_23 = arith.constant 0 : index
    %31 = vector.load %arg3[%c0_22, %c0_23] : memref<64x64xf32, #tpu.memory_space<vmem>>, vector<64x64xf32>
    %cst_24 = arith.constant dense<0.000000e+00> : vector<8x64xf32>
    %32 = tpu.matmul %30, %31, %cst_24 {dimension_numbers = #tpu.dot_dimension_numbers<[1], [0], [0], [1], [0, 0, 1, 1], [], []>} : vector<8x64xf32>, vector<64x64xf32>, vector<8x64xf32> -> vector<8x64xf32>
    %33 = arith.addf %32, %23 : vector<8x64xf32>
    %34 = arith.addf %33, %2 : vector<8x64xf32>
    %35 = math.tanh %34 : vector<8x64xf32>
    %36 = arith.index_cast %c1_i32 : i32 to index
    %c0_25 = arith.constant 0 : index
    %c0_26 = arith.constant 0 : index
    %37 = vector.load %arg6[%36, %c0_25, %c0_26] : memref<8x8x64xf32, #tpu.memory_space<vmem>>, vector<1x8x64xf32>
    %38 = vector.shape_cast %37 : vector<1x8x64xf32> to vector<8x64xf32>
    %39 = vector.shape_cast %35 : vector<8x64xf32> to vector<1x8x64xf32>
    tpu.vector_store %arg6[%36, %c0_25, %c0_26], %39 {strides = array<i32>} : memref<8x8x64xf32, #tpu.memory_space<vmem>>, vector<1x8x64xf32>,
    %c2_i32 = arith.constant 2 : i32
    %c0_27 = arith.constant 0 : index
    %c0_28 = arith.constant 0 : index
    %40 = vector.load %arg4[%c0_27, %c0_28] : memref<64x64xf32, #tpu.memory_space<vmem>>, vector<64x64xf32>
    %cst_29 = arith.constant dense<0.000000e+00> : vector<8x64xf32>
    %41 = tpu.matmul %35, %40, %cst_29 {dimension_numbers = #tpu.dot_dimension_numbers<[1], [0], [0], [1], [0, 0, 1, 1], [], []>} : vector<8x64xf32>, vector<64x64xf32>, vector<8x64xf32> -> vector<8x64xf32>
    %42 = arith.index_cast %c2_i32 : i32 to index
    %c0_30 = arith.constant 0 : index
    %c0_31 = arith.constant 0 : index
    %43 = vector.load %arg1[%42, %c0_30, %c0_31] : memref<8x8x64xf32, #tpu.memory_space<vmem>>, vector<1x8x64xf32>
    %44 = vector.shape_cast %43 : vector<1x8x64xf32> to vector<8x64xf32>
    %c0_32 = arith.constant 0 : index
    %c0_33 = arith.constant 0 : index
    %45 = vector.load %arg2[%c0_32, %c0_33] : memref<64x64xf32, #tpu.memory_space<vmem>>, vector<64x64xf32>
    %cst_34 = arith.constant dense<0.000000e+00> : vector<8x64xf32>
    %46 = tpu.matmul %30, %45, %cst_34 {dimension_numbers = #tpu.dot_dimension_numbers<[1], [0], [0], [1], [0, 0, 1, 1], [], []>} : vector<8x64xf32>, vector<64x64xf32>, vector<8x64xf32> -> vector<8x64xf32>
    %47 = arith.addf %44, %46 : vector<8x64xf32>
    %48 = math.tanh %47 : vector<8x64xf32>
    %c0_35 = arith.constant 0 : index
    %c0_36 = arith.constant 0 : index
    %49 = vector.load %arg3[%c0_35, %c0_36] : memref<64x64xf32, #tpu.memory_space<vmem>>, vector<64x64xf32>
    %cst_37 = arith.constant dense<0.000000e+00> : vector<8x64xf32>
    %50 = tpu.matmul %48, %49, %cst_37 {dimension_numbers = #tpu.dot_dimension_numbers<[1], [0], [0], [1], [0, 0, 1, 1], [], []>} : vector<8x64xf32>, vector<64x64xf32>, vector<8x64xf32> -> vector<8x64xf32>
    %51 = arith.addf %50, %41 : vector<8x64xf32>
    %52 = arith.addf %51, %2 : vector<8x64xf32>
    %53 = math.tanh %52 : vector<8x64xf32>
    %54 = arith.index_cast %c2_i32 : i32 to index
    %c0_38 = arith.constant 0 : index
    %c0_39 = arith.constant 0 : index
    %55 = vector.load %arg6[%54, %c0_38, %c0_39] : memref<8x8x64xf32, #tpu.memory_space<vmem>>, vector<1x8x64xf32>
    %56 = vector.shape_cast %55 : vector<1x8x64xf32> to vector<8x64xf32>
    %57 = vector.shape_cast %53 : vector<8x64xf32> to vector<1x8x64xf32>
    tpu.vector_store %arg6[%54, %c0_38, %c0_39], %57 {strides = array<i32>} : memref<8x8x64xf32, #tpu.memory_space<vmem>>, vector<1x8x64xf32>,
    %c3_i32 = arith.constant 3 : i32
    %c0_40 = arith.constant 0 : index
    %c0_41 = arith.constant 0 : index
    %58 = vector.load %arg4[%c0_40, %c0_41] : memref<64x64xf32, #tpu.memory_space<vmem>>, vector<64x64xf32>
    %cst_42 = arith.constant dense<0.000000e+00> : vector<8x64xf32>
    %59 = tpu.matmul %53, %58, %cst_42 {dimension_numbers = #tpu.dot_dimension_numbers<[1], [0], [0], [1], [0, 0, 1, 1], [], []>} : vector<8x64xf32>, vector<64x64xf32>, vector<8x64xf32> -> vector<8x64xf32>
    %60 = arith.index_cast %c3_i32 : i32 to index
    %c0_43 = arith.constant 0 : index
    %c0_44 = arith.constant 0 : index
    %61 = vector.load %arg1[%60, %c0_43, %c0_44] : memref<8x8x64xf32, #tpu.memory_space<vmem>>, vector<1x8x64xf32>
    %62 = vector.shape_cast %61 : vector<1x8x64xf32> to vector<8x64xf32>
    %c0_45 = arith.constant 0 : index
    %c0_46 = arith.constant 0 : index
    %63 = vector.load %arg2[%c0_45, %c0_46] : memref<64x64xf32, #tpu.memory_space<vmem>>, vector<64x64xf32>
    %cst_47 = arith.constant dense<0.000000e+00> : vector<8x64xf32>
    %64 = tpu.matmul %48, %63, %cst_47 {dimension_numbers = #tpu.dot_dimension_numbers<[1], [0], [0], [1], [0, 0, 1, 1], [], []>} : vector<8x64xf32>, vector<64x64xf32>, vector<8x64xf32> -> vector<8x64xf32>
    %65 = arith.addf %62, %64 : vector<8x64xf32>
    %66 = math.tanh %65 : vector<8x64xf32>
    %c0_48 = arith.constant 0 : index
    %c0_49 = arith.constant 0 : index
    %67 = vector.load %arg3[%c0_48, %c0_49] : memref<64x64xf32, #tpu.memory_space<vmem>>, vector<64x64xf32>
    %cst_50 = arith.constant dense<0.000000e+00> : vector<8x64xf32>
    %68 = tpu.matmul %66, %67, %cst_50 {dimension_numbers = #tpu.dot_dimension_numbers<[1], [0], [0], [1], [0, 0, 1, 1], [], []>} : vector<8x64xf32>, vector<64x64xf32>, vector<8x64xf32> -> vector<8x64xf32>
    %69 = arith.addf %68, %59 : vector<8x64xf32>
    %70 = arith.addf %69, %2 : vector<8x64xf32>
    %71 = math.tanh %70 : vector<8x64xf32>
    %72 = arith.index_cast %c3_i32 : i32 to index
    %c0_51 = arith.constant 0 : index
    %c0_52 = arith.constant 0 : index
    %73 = vector.load %arg6[%72, %c0_51, %c0_52] : memref<8x8x64xf32, #tpu.memory_space<vmem>>, vector<1x8x64xf32>
    %74 = vector.shape_cast %73 : vector<1x8x64xf32> to vector<8x64xf32>
    %75 = vector.shape_cast %71 : vector<8x64xf32> to vector<1x8x64xf32>
    tpu.vector_store %arg6[%72, %c0_51, %c0_52], %75 {strides = array<i32>} : memref<8x8x64xf32, #tpu.memory_space<vmem>>, vector<1x8x64xf32>,
    %c4_i32 = arith.constant 4 : i32
    %c0_53 = arith.constant 0 : index
    %c0_54 = arith.constant 0 : index
    %76 = vector.load %arg4[%c0_53, %c0_54] : memref<64x64xf32, #tpu.memory_space<vmem>>, vector<64x64xf32>
    %cst_55 = arith.constant dense<0.000000e+00> : vector<8x64xf32>
    %77 = tpu.matmul %71, %76, %cst_55 {dimension_numbers = #tpu.dot_dimension_numbers<[1], [0], [0], [1], [0, 0, 1, 1], [], []>} : vector<8x64xf32>, vector<64x64xf32>, vector<8x64xf32> -> vector<8x64xf32>
    %78 = arith.index_cast %c4_i32 : i32 to index
    %c0_56 = arith.constant 0 : index
    %c0_57 = arith.constant 0 : index
    %79 = vector.load %arg1[%78, %c0_56, %c0_57] : memref<8x8x64xf32, #tpu.memory_space<vmem>>, vector<1x8x64xf32>
    %80 = vector.shape_cast %79 : vector<1x8x64xf32> to vector<8x64xf32>
    %c0_58 = arith.constant 0 : index
    %c0_59 = arith.constant 0 : index
    %81 = vector.load %arg2[%c0_58, %c0_59] : memref<64x64xf32, #tpu.memory_space<vmem>>, vector<64x64xf32>
    %cst_60 = arith.constant dense<0.000000e+00> : vector<8x64xf32>
    %82 = tpu.matmul %66, %81, %cst_60 {dimension_numbers = #tpu.dot_dimension_numbers<[1], [0], [0], [1], [0, 0, 1, 1], [], []>} : vector<8x64xf32>, vector<64x64xf32>, vector<8x64xf32> -> vector<8x64xf32>
    %83 = arith.addf %80, %82 : vector<8x64xf32>
    %84 = math.tanh %83 : vector<8x64xf32>
    %c0_61 = arith.constant 0 : index
    %c0_62 = arith.constant 0 : index
    %85 = vector.load %arg3[%c0_61, %c0_62] : memref<64x64xf32, #tpu.memory_space<vmem>>, vector<64x64xf32>
    %cst_63 = arith.constant dense<0.000000e+00> : vector<8x64xf32>
    %86 = tpu.matmul %84, %85, %cst_63 {dimension_numbers = #tpu.dot_dimension_numbers<[1], [0], [0], [1], [0, 0, 1, 1], [], []>} : vector<8x64xf32>, vector<64x64xf32>, vector<8x64xf32> -> vector<8x64xf32>
    %87 = arith.addf %86, %77 : vector<8x64xf32>
    %88 = arith.addf %87, %2 : vector<8x64xf32>
    %89 = math.tanh %88 : vector<8x64xf32>
    %90 = arith.index_cast %c4_i32 : i32 to index
    %c0_64 = arith.constant 0 : index
    %c0_65 = arith.constant 0 : index
    %91 = vector.load %arg6[%90, %c0_64, %c0_65] : memref<8x8x64xf32, #tpu.memory_space<vmem>>, vector<1x8x64xf32>
    %92 = vector.shape_cast %91 : vector<1x8x64xf32> to vector<8x64xf32>
    %93 = vector.shape_cast %89 : vector<8x64xf32> to vector<1x8x64xf32>
    tpu.vector_store %arg6[%90, %c0_64, %c0_65], %93 {strides = array<i32>} : memref<8x8x64xf32, #tpu.memory_space<vmem>>, vector<1x8x64xf32>,
    %c5_i32 = arith.constant 5 : i32
    %c0_66 = arith.constant 0 : index
    %c0_67 = arith.constant 0 : index
    %94 = vector.load %arg4[%c0_66, %c0_67] : memref<64x64xf32, #tpu.memory_space<vmem>>, vector<64x64xf32>
    %cst_68 = arith.constant dense<0.000000e+00> : vector<8x64xf32>
    %95 = tpu.matmul %89, %94, %cst_68 {dimension_numbers = #tpu.dot_dimension_numbers<[1], [0], [0], [1], [0, 0, 1, 1], [], []>} : vector<8x64xf32>, vector<64x64xf32>, vector<8x64xf32> -> vector<8x64xf32>
    %96 = arith.index_cast %c5_i32 : i32 to index
    %c0_69 = arith.constant 0 : index
    %c0_70 = arith.constant 0 : index
    %97 = vector.load %arg1[%96, %c0_69, %c0_70] : memref<8x8x64xf32, #tpu.memory_space<vmem>>, vector<1x8x64xf32>
    %98 = vector.shape_cast %97 : vector<1x8x64xf32> to vector<8x64xf32>
    %c0_71 = arith.constant 0 : index
    %c0_72 = arith.constant 0 : index
    %99 = vector.load %arg2[%c0_71, %c0_72] : memref<64x64xf32, #tpu.memory_space<vmem>>, vector<64x64xf32>
    %cst_73 = arith.constant dense<0.000000e+00> : vector<8x64xf32>
    %100 = tpu.matmul %84, %99, %cst_73 {dimension_numbers = #tpu.dot_dimension_numbers<[1], [0], [0], [1], [0, 0, 1, 1], [], []>} : vector<8x64xf32>, vector<64x64xf32>, vector<8x64xf32> -> vector<8x64xf32>
    %101 = arith.addf %98, %100 : vector<8x64xf32>
    %102 = math.tanh %101 : vector<8x64xf32>
    %c0_74 = arith.constant 0 : index
    %c0_75 = arith.constant 0 : index
    %103 = vector.load %arg3[%c0_74, %c0_75] : memref<64x64xf32, #tpu.memory_space<vmem>>, vector<64x64xf32>
    %cst_76 = arith.constant dense<0.000000e+00> : vector<8x64xf32>
    %104 = tpu.matmul %102, %103, %cst_76 {dimension_numbers = #tpu.dot_dimension_numbers<[1], [0], [0], [1], [0, 0, 1, 1], [], []>} : vector<8x64xf32>, vector<64x64xf32>, vector<8x64xf32> -> vector<8x64xf32>
    %105 = arith.addf %104, %95 : vector<8x64xf32>
    %106 = arith.addf %105, %2 : vector<8x64xf32>
    %107 = math.tanh %106 : vector<8x64xf32>
    %108 = arith.index_cast %c5_i32 : i32 to index
    %c0_77 = arith.constant 0 : index
    %c0_78 = arith.constant 0 : index
    %109 = vector.load %arg6[%108, %c0_77, %c0_78] : memref<8x8x64xf32, #tpu.memory_space<vmem>>, vector<1x8x64xf32>
    %110 = vector.shape_cast %109 : vector<1x8x64xf32> to vector<8x64xf32>
    %111 = vector.shape_cast %107 : vector<8x64xf32> to vector<1x8x64xf32>
    tpu.vector_store %arg6[%108, %c0_77, %c0_78], %111 {strides = array<i32>} : memref<8x8x64xf32, #tpu.memory_space<vmem>>, vector<1x8x64xf32>,
    %c6_i32 = arith.constant 6 : i32
    %c0_79 = arith.constant 0 : index
    %c0_80 = arith.constant 0 : index
    %112 = vector.load %arg4[%c0_79, %c0_80] : memref<64x64xf32, #tpu.memory_space<vmem>>, vector<64x64xf32>
    %cst_81 = arith.constant dense<0.000000e+00> : vector<8x64xf32>
    %113 = tpu.matmul %107, %112, %cst_81 {dimension_numbers = #tpu.dot_dimension_numbers<[1], [0], [0], [1], [0, 0, 1, 1], [], []>} : vector<8x64xf32>, vector<64x64xf32>, vector<8x64xf32> -> vector<8x64xf32>
    %114 = arith.index_cast %c6_i32 : i32 to index
    %c0_82 = arith.constant 0 : index
    %c0_83 = arith.constant 0 : index
    %115 = vector.load %arg1[%114, %c0_82, %c0_83] : memref<8x8x64xf32, #tpu.memory_space<vmem>>, vector<1x8x64xf32>
    %116 = vector.shape_cast %115 : vector<1x8x64xf32> to vector<8x64xf32>
    %c0_84 = arith.constant 0 : index
    %c0_85 = arith.constant 0 : index
    %117 = vector.load %arg2[%c0_84, %c0_85] : memref<64x64xf32, #tpu.memory_space<vmem>>, vector<64x64xf32>
    %cst_86 = arith.constant dense<0.000000e+00> : vector<8x64xf32>
    %118 = tpu.matmul %102, %117, %cst_86 {dimension_numbers = #tpu.dot_dimension_numbers<[1], [0], [0], [1], [0, 0, 1, 1], [], []>} : vector<8x64xf32>, vector<64x64xf32>, vector<8x64xf32> -> vector<8x64xf32>
    %119 = arith.addf %116, %118 : vector<8x64xf32>
    %120 = math.tanh %119 : vector<8x64xf32>
    %c0_87 = arith.constant 0 : index
    %c0_88 = arith.constant 0 : index
    %121 = vector.load %arg3[%c0_87, %c0_88] : memref<64x64xf32, #tpu.memory_space<vmem>>, vector<64x64xf32>
    %cst_89 = arith.constant dense<0.000000e+00> : vector<8x64xf32>
    %122 = tpu.matmul %120, %121, %cst_89 {dimension_numbers = #tpu.dot_dimension_numbers<[1], [0], [0], [1], [0, 0, 1, 1], [], []>} : vector<8x64xf32>, vector<64x64xf32>, vector<8x64xf32> -> vector<8x64xf32>
    %123 = arith.addf %122, %113 : vector<8x64xf32>
    %124 = arith.addf %123, %2 : vector<8x64xf32>
    %125 = math.tanh %124 : vector<8x64xf32>
    %126 = arith.index_cast %c6_i32 : i32 to index
    %c0_90 = arith.constant 0 : index
    %c0_91 = arith.constant 0 : index
    %127 = vector.load %arg6[%126, %c0_90, %c0_91] : memref<8x8x64xf32, #tpu.memory_space<vmem>>, vector<1x8x64xf32>
    %128 = vector.shape_cast %127 : vector<1x8x64xf32> to vector<8x64xf32>
    %129 = vector.shape_cast %125 : vector<8x64xf32> to vector<1x8x64xf32>
    tpu.vector_store %arg6[%126, %c0_90, %c0_91], %129 {strides = array<i32>} : memref<8x8x64xf32, #tpu.memory_space<vmem>>, vector<1x8x64xf32>,
    %c7_i32 = arith.constant 7 : i32
    %c0_92 = arith.constant 0 : index
    %c0_93 = arith.constant 0 : index
    %130 = vector.load %arg4[%c0_92, %c0_93] : memref<64x64xf32, #tpu.memory_space<vmem>>, vector<64x64xf32>
    %cst_94 = arith.constant dense<0.000000e+00> : vector<8x64xf32>
    %131 = tpu.matmul %125, %130, %cst_94 {dimension_numbers = #tpu.dot_dimension_numbers<[1], [0], [0], [1], [0, 0, 1, 1], [], []>} : vector<8x64xf32>, vector<64x64xf32>, vector<8x64xf32> -> vector<8x64xf32>
    %132 = arith.index_cast %c7_i32 : i32 to index
    %c0_95 = arith.constant 0 : index
    %c0_96 = arith.constant 0 : index
    %133 = vector.load %arg1[%132, %c0_95, %c0_96] : memref<8x8x64xf32, #tpu.memory_space<vmem>>, vector<1x8x64xf32>
    %134 = vector.shape_cast %133 : vector<1x8x64xf32> to vector<8x64xf32>
    %c0_97 = arith.constant 0 : index
    %c0_98 = arith.constant 0 : index
    %135 = vector.load %arg2[%c0_97, %c0_98] : memref<64x64xf32, #tpu.memory_space<vmem>>, vector<64x64xf32>
    %cst_99 = arith.constant dense<0.000000e+00> : vector<8x64xf32>
    %136 = tpu.matmul %120, %135, %cst_99 {dimension_numbers = #tpu.dot_dimension_numbers<[1], [0], [0], [1], [0, 0, 1, 1], [], []>} : vector<8x64xf32>, vector<64x64xf32>, vector<8x64xf32> -> vector<8x64xf32>
    %137 = arith.addf %134, %136 : vector<8x64xf32>
    %138 = math.tanh %137 : vector<8x64xf32>
    %c0_100 = arith.constant 0 : index
    %c0_101 = arith.constant 0 : index
    %139 = vector.load %arg3[%c0_100, %c0_101] : memref<64x64xf32, #tpu.memory_space<vmem>>, vector<64x64xf32>
    %cst_102 = arith.constant dense<0.000000e+00> : vector<8x64xf32>
    %140 = tpu.matmul %138, %139, %cst_102 {dimension_numbers = #tpu.dot_dimension_numbers<[1], [0], [0], [1], [0, 0, 1, 1], [], []>} : vector<8x64xf32>, vector<64x64xf32>, vector<8x64xf32> -> vector<8x64xf32>
    %141 = arith.addf %140, %131 : vector<8x64xf32>
    %142 = arith.addf %141, %2 : vector<8x64xf32>
    %143 = math.tanh %142 : vector<8x64xf32>
    %144 = arith.index_cast %c7_i32 : i32 to index
    %c0_103 = arith.constant 0 : index
    %c0_104 = arith.constant 0 : index
    %145 = vector.load %arg6[%144, %c0_103, %c0_104] : memref<8x8x64xf32, #tpu.memory_space<vmem>>, vector<1x8x64xf32>
    %146 = vector.shape_cast %145 : vector<1x8x64xf32> to vector<8x64xf32>
    %147 = vector.shape_cast %143 : vector<8x64xf32> to vector<1x8x64xf32>
    tpu.vector_store %arg6[%144, %c0_103, %c0_104], %147 {strides = array<i32>} : memref<8x8x64xf32, #tpu.memory_space<vmem>>, vector<1x8x64xf32>,
    %c8_i32 = arith.constant 8 : i32
    return
  }
  func.func @transform_0(%arg0: i32) -> (i32, i32, i32) {
    %c0_i32 = arith.constant 0 : i32
    %c0_i32_0 = arith.constant 0 : i32
    %c0_i32_1 = arith.constant 0 : i32
    return %c0_i32, %arg0, %c0_i32_0 : i32, i32, i32
  }
  func.func @transform_1(%arg0: i32) -> (i32, i32) {
    %c0_i32 = arith.constant 0 : i32
    %c0_i32_0 = arith.constant 0 : i32
    %c0_i32_1 = arith.constant 0 : i32
    return %c0_i32, %c0_i32_0 : i32, i32
  }
  func.func @transform_2(%arg0: i32) -> (i32, i32) {
    %c0_i32 = arith.constant 0 : i32
    %c0_i32_0 = arith.constant 0 : i32
    %c0_i32_1 = arith.constant 0 : i32
    return %c0_i32, %c0_i32_0 : i32, i32
  }
  func.func @transform_3(%arg0: i32) -> (i32, i32) {
    %c0_i32 = arith.constant 0 : i32
    %c0_i32_0 = arith.constant 0 : i32
    %c0_i32_1 = arith.constant 0 : i32
    return %c0_i32, %c0_i32_0 : i32, i32
  }
  func.func @transform_4(%arg0: i32) -> (i32, i32) {
    %c0_i32 = arith.constant 0 : i32
    %c0_i32_0 = arith.constant 0 : i32
    %c0_i32_1 = arith.constant 0 : i32
    return %c0_i32, %c0_i32_0 : i32, i32
  }
  func.func @transform_5(%arg0: i32) -> (i32, i32, i32) {
    %c0_i32 = arith.constant 0 : i32
    %c0_i32_0 = arith.constant 0 : i32
    %c0_i32_1 = arith.constant 0 : i32
    return %c0_i32, %arg0, %c0_i32_0 : i32, i32, i32
  }
}

</mosaic_0001>

<llo_original>
// kernel: my_pt_rnn_forward.1
$region0: #{my_pt_rnn_forward.1}
  #allocation0 [shape = 'u32[]', space=smem, size = 0x4, offset = 0x4, fixed_abs, tag = 'smem constant byte address 0x4 - core index']
  #allocation1 [shape = 'u32[144,128]{1,0:T(1,128)}', space=vmem, size = 0x12000, scoped, tag = 'internal scratch']
  %s0 = inlined_call_operand.vmem [shape: f32[8,8,64], index: 0, kind: input, shape index: {}]
  %s1 = inlined_call_operand.vmem [shape: f32[64,64], index: 1, kind: input, shape index: {}]
  %s2 = inlined_call_operand.vmem [shape: f32[64,64], index: 2, kind: input, shape index: {}]
  %s3 = inlined_call_operand.vmem [shape: f32[64,64], index: 3, kind: input, shape index: {}]
  %s4 = inlined_call_operand.vmem [shape: f32[1,64], index: 4, kind: input, shape index: {}]
  %s5 = inlined_call_operand.vmem [shape: f32[8,8,64], index: 5, kind: output, shape index: {}]
  %s6 = sld [smem:[#allocation0]]
  $region30: #{my_pt_rnn_forward.1} parent=0
    _
  %s8 = ssub.s32 1, %s6
  %s9 = scalar_select 0, %s8, %s6
  // Predicated region
  $region2: #{my_pt_rnn_forward.1} parent=0 // pred_check
    _
  $region3: #{my_pt_rnn_forward.1} parent=0 // pred_check_branch
    %11 = sbr.rel (0) target = $region5
  $region4: #{my_pt_rnn_forward.1} parent=0 // pred_region
    _
  $region5: #{my_pt_rnn_forward.1} parent=0 // pred_fallthru
    _
  // Predicated region
  $region6: #{my_pt_rnn_forward.1} parent=0 // pred_check
    _
  $region7: #{my_pt_rnn_forward.1} parent=0 // pred_check_branch
    %13 = sbr.rel (0) target = $region9
  $region8: #{my_pt_rnn_forward.1} parent=0 // pred_region
    _
  $region9: #{my_pt_rnn_forward.1} parent=0 // pred_fallthru
    _
  // Predicated region
  $region10: #{my_pt_rnn_forward.1} parent=0 // pred_check
    _
  $region11: #{my_pt_rnn_forward.1} parent=0 // pred_check_branch
    %15 = sbr.rel (0) target = $region13
  $region12: #{my_pt_rnn_forward.1} parent=0 // pred_region
    _
  $region13: #{my_pt_rnn_forward.1} parent=0 // pred_fallthru
    _
  // Predicated region
  $region14: #{my_pt_rnn_forward.1} parent=0 // pred_check
    _
  $region15: #{my_pt_rnn_forward.1} parent=0 // pred_check_branch
    %17 = sbr.rel (0) target = $region17
  $region16: #{my_pt_rnn_forward.1} parent=0 // pred_region
    _
  $region17: #{my_pt_rnn_forward.1} parent=0 // pred_fallthru
    _
  // Predicated region
  $region18: #{my_pt_rnn_forward.1} parent=0 // pred_check
    _
  $region19: #{my_pt_rnn_forward.1} parent=0 // pred_check_branch
    %19 = sbr.rel (0) target = $region21
  $region20: #{my_pt_rnn_forward.1} parent=0 // pred_region
    _
  $region21: #{my_pt_rnn_forward.1} parent=0 // pred_fallthru
    _
  %v20 = vld [vmem:[%s4] sm:$0x1]
  %v22 = vlaneseq
  %v23 = vshrl.u32 %v22, 7
  %v24 = vsub.s32 0, %v23
  %v25 = vrot.slane %v20, %v24
  %v27 = vld [vmem:[%s3] sm:$0xff]
  %v28 = vld [vmem:[%s3 + $0x8] sm:$0xff]
  %v29 = vld [vmem:[%s3 + $0x10] sm:$0xff]
  %v30 = vld [vmem:[%s3 + $0x18] sm:$0xff]
  %v31 = vld [vmem:[%s3 + $0x20] sm:$0xff]
  %v32 = vld [vmem:[%s3 + $0x28] sm:$0xff]
  %v33 = vld [vmem:[%s3 + $0x30] sm:$0xff]
  %v34 = vld [vmem:[%s3 + $0x38] sm:$0xff]
  %vm35 = vcmask 523264
  %v37 = vsel %vm35, 0.0, 0
  %39 = vmatprep.subr.mxu0 0.0
  %40 = vmatpush1.msra.mxu0 %v27
  %41 = vmatprep.subr.mxu0 0.0
  %42 = vmatpush1.msra.mxu0 %v28
  %43 = vmatprep.subr.mxu0 0.0
  %44 = vmatpush1.msra.mxu0 %v29
  %45 = vmatprep.subr.mxu0 0.0
  %46 = vmatpush1.msra.mxu0 %v30
  %47 = vmatprep.subr.mxu0 0.0
  %48 = vmatpush1.msra.mxu0 %v31
  %49 = vmatprep.subr.mxu0 0.0
  %50 = vmatpush1.msra.mxu0 %v32
  %51 = vmatprep.subr.mxu0 0.0
  %52 = vmatpush1.msra.mxu0 %v33
  %53 = vmatprep.subr.mxu0 0.0
  %54 = vmatpush1.msra.mxu0 %v34
  %55 = vmatprep.subr.mxu0 0.0
  %56 = vmatpush1.msra.mxu0 0.0
  %57 = vmatprep.subr.mxu0 0.0
  %58 = vmatpush1.msra.mxu0 0.0
  %59 = vmatprep.subr.mxu0 0.0
  %60 = vmatpush1.msra.mxu0 0.0
  %61 = vmatprep.subr.mxu0 0.0
  %62 = vmatpush1.msra.mxu0 0.0
  %63 = vmatprep.subr.mxu0 0.0
  %64 = vmatpush1.msra.mxu0 0.0
  %65 = vmatprep.subr.mxu0 0.0
  %66 = vmatpush1.msra.mxu0 0.0
  %67 = vmatprep.subr.mxu0 0.0
  %68 = vmatpush1.msra.mxu0 0.0
  %69 = vmatprep.subr.mxu0 0.0
  %70 = vmatpush1.msra.mxu0 0.0
  %71 = vmatprep.subr.mxu0 0.0
  %72 = vmatpush1.msra.mxu0 0.0
  %73 = vmatprep.subr.mxu0 0.0
  %74 = vmatpush1.msra.mxu0 0.0
  %75 = vmatprep.subr.mxu0 0.0
  %76 = vmatpush1.msra.mxu0 0.0
  %77 = vmatprep.subr.mxu0 0.0
  %78 = vmatpush1.msra.mxu0 0.0
  %79 = vmatprep.subr.mxu0 0.0
  %80 = vmatpush1.msra.mxu0 0.0
  %81 = vmatprep.subr.mxu0 0.0
  %82 = vmatpush1.msra.mxu0 0.0
  %83 = vmatprep.subr.mxu0 0.0
  %84 = vmatpush1.msra.mxu0 0.0
  %85 = vmatprep.subr.mxu0 0.0
  %86 = vmatpush1.msra.mxu0 0.0
  %87 = vmatprep.subr.mxu0 0.0
  %88 = vmatpush1.msra.mxu0 0.0
  %89 = vmatprep.subr.mxu0 0.0
  %90 = vmatpush1.msra.mxu0 0.0
  %91 = vmatprep.subr.mxu0 0.0
  %92 = vmatpush1.msra.mxu0 0.0
  %93 = vmatprep.subr.mxu0 0.0
  %94 = vmatpush1.msra.mxu0 0.0
  %95 = vmatprep.subr.mxu0 0.0
  %96 = vmatpush1.msra.mxu0 0.0
  %97 = vmatprep.subr.mxu0 0.0
  %98 = vmatpush1.msra.mxu0 0.0
  %99 = vmatprep.subr.mxu0 0.0
  %100 = vmatpush1.msra.mxu0 0.0
  %101 = vmatprep.subr.mxu0 0.0
  %102 = vmatpush1.msra.mxu0 0.0
  %103 = vmatprep.mubr.f32.mxu0 0.0
  %104 = vmatmul.mubr.f32.gmra.mrb[0].mxu0 %v37
  %v105 = vpop.f32.mrb[0].mxu0
  %v106 = vadd.f32 0.0, %v105
  %v107 = vpop.f32.mrb[0].mxu0
  %108 = vdwg.mxu0
  %v109 = vld [vmem:[%s0] sm:$0xff]
  %v110 = vld [vmem:[%s1] sm:$0xff]
  %v111 = vld [vmem:[%s1 + $0x8] sm:$0xff]
  %v112 = vld [vmem:[%s1 + $0x10] sm:$0xff]
  %v113 = vld [vmem:[%s1 + $0x18] sm:$0xff]
  %v114 = vld [vmem:[%s1 + $0x20] sm:$0xff]
  %v115 = vld [vmem:[%s1 + $0x28] sm:$0xff]
  %v116 = vld [vmem:[%s1 + $0x30] sm:$0xff]
  %v117 = vld [vmem:[%s1 + $0x38] sm:$0xff]
  %118 = vmatprep.subr.mxu0 0.0
  %119 = vmatpush1.msra.mxu0 %v110
  %120 = vmatprep.subr.mxu0 0.0
  %121 = vmatpush1.msra.mxu0 %v111
  %122 = vmatprep.subr.mxu0 0.0
  %123 = vmatpush1.msra.mxu0 %v112
  %124 = vmatprep.subr.mxu0 0.0
  %125 = vmatpush1.msra.mxu0 %v113
  %126 = vmatprep.subr.mxu0 0.0
  %127 = vmatpush1.msra.mxu0 %v114
  %128 = vmatprep.subr.mxu0 0.0
  %129 = vmatpush1.msra.mxu0 %v115
  %130 = vmatprep.subr.mxu0 0.0
  %131 = vmatpush1.msra.mxu0 %v116
  %132 = vmatprep.subr.mxu0 0.0
  %133 = vmatpush1.msra.mxu0 %v117
  %134 = vmatprep.subr.mxu0 0.0
  %135 = vmatpush1.msra.mxu0 0.0
  %136 = vmatprep.subr.mxu0 0.0
  %137 = vmatpush1.msra.mxu0 0.0
  %138 = vmatprep.subr.mxu0 0.0
  %139 = vmatpush1.msra.mxu0 0.0
  %140 = vmatprep.subr.mxu0 0.0
  %141 = vmatpush1.msra.mxu0 0.0
  %142 = vmatprep.subr.mxu0 0.0
  %143 = vmatpush1.msra.mxu0 0.0
  %144 = vmatprep.subr.mxu0 0.0
  %145 = vmatpush1.msra.mxu0 0.0
  %146 = vmatprep.subr.mxu0 0.0
  %147 = vmatpush1.msra.mxu0 0.0
  %148 = vmatprep.subr.mxu0 0.0
  %149 = vmatpush1.msra.mxu0 0.0
  %150 = vmatprep.subr.mxu0 0.0
  %151 = vmatpush1.msra.mxu0 0.0
  %152 = vmatprep.subr.mxu0 0.0
  %153 = vmatpush1.msra.mxu0 0.0
  %154 = vmatprep.subr.mxu0 0.0
  %155 = vmatpush1.msra.mxu0 0.0
  %156 = vmatprep.subr.mxu0 0.0
  %157 = vmatpush1.msra.mxu0 0.0
  %158 = vmatprep.subr.mxu0 0.0
  %159 = vmatpush1.msra.mxu0 0.0
  %160 = vmatprep.subr.mxu0 0.0
  %161 = vmatpush1.msra.mxu0 0.0
  %162 = vmatprep.subr.mxu0 0.0
  %163 = vmatpush1.msra.mxu0 0.0
  %164 = vmatprep.subr.mxu0 0.0
  %165 = vmatpush1.msra.mxu0 0.0
  %166 = vmatprep.subr.mxu0 0.0
  %167 = vmatpush1.msra.mxu0 0.0
  %168 = vmatprep.subr.mxu0 0.0
  %169 = vmatpush1.msra.mxu0 0.0
  %170 = vmatprep.subr.mxu0 0.0
  %171 = vmatpush1.msra.mxu0 0.0
  %172 = vmatprep.subr.mxu0 0.0
  %173 = vmatpush1.msra.mxu0 0.0
  %174 = vmatprep.subr.mxu0 0.0
  %175 = vmatpush1.msra.mxu0 0.0
  %176 = vmatprep.subr.mxu0 0.0
  %177 = vmatpush1.msra.mxu0 0.0
  %178 = vmatprep.subr.mxu0 0.0
  %179 = vmatpush1.msra.mxu0 0.0
  %180 = vmatprep.subr.mxu0 0.0
  %181 = vmatpush1.msra.mxu0 0.0
  %182 = vmatprep.mubr.f32.mxu0 0.0
  %183 = vmatmul.mubr.f32.gmra.mrb[0].mxu0 %v37
  %v184 = vpop.f32.mrb[0].mxu0
  %v185 = vadd.f32 0.0, %v184
  %v186 = vpop.f32.mrb[0].mxu0
  %187 = vdwg.mxu0
  %v188 = vadd.f32 %v109, %v185
  %v189 = vtanh.pop %v188
  %v190 = vld [vmem:[%s2] sm:$0xff]
  %v191 = vld [vmem:[%s2 + $0x8] sm:$0xff]
  %v192 = vld [vmem:[%s2 + $0x10] sm:$0xff]
  %v193 = vld [vmem:[%s2 + $0x18] sm:$0xff]
  %v194 = vld [vmem:[%s2 + $0x20] sm:$0xff]
  %v195 = vld [vmem:[%s2 + $0x28] sm:$0xff]
  %v196 = vld [vmem:[%s2 + $0x30] sm:$0xff]
  %v197 = vld [vmem:[%s2 + $0x38] sm:$0xff]
  %v199 = vsel %vm35, %v189, 0
  %201 = vmatprep.subr.mxu0 0.0
  %202 = vmatpush1.msra.mxu0 %v190
  %203 = vmatprep.subr.mxu0 0.0
  %204 = vmatpush1.msra.mxu0 %v191
  %205 = vmatprep.subr.mxu0 0.0
  %206 = vmatpush1.msra.mxu0 %v192
  %207 = vmatprep.subr.mxu0 0.0
  %208 = vmatpush1.msra.mxu0 %v193
  %209 = vmatprep.subr.mxu0 0.0
  %210 = vmatpush1.msra.mxu0 %v194
  %211 = vmatprep.subr.mxu0 0.0
  %212 = vmatpush1.msra.mxu0 %v195
  %213 = vmatprep.subr.mxu0 0.0
  %214 = vmatpush1.msra.mxu0 %v196
  %215 = vmatprep.subr.mxu0 0.0
  %216 = vmatpush1.msra.mxu0 %v197
  %217 = vmatprep.subr.mxu0 0.0
  %218 = vmatpush1.msra.mxu0 0.0
  %219 = vmatprep.subr.mxu0 0.0
  %220 = vmatpush1.msra.mxu0 0.0
  %221 = vmatprep.subr.mxu0 0.0
  %222 = vmatpush1.msra.mxu0 0.0
  %223 = vmatprep.subr.mxu0 0.0
  %224 = vmatpush1.msra.mxu0 0.0
  %225 = vmatprep.subr.mxu0 0.0
  %226 = vmatpush1.msra.mxu0 0.0
  %227 = vmatprep.subr.mxu0 0.0
  %228 = vmatpush1.msra.mxu0 0.0
  %229 = vmatprep.subr.mxu0 0.0
  %230 = vmatpush1.msra.mxu0 0.0
  %231 = vmatprep.subr.mxu0 0.0
  %232 = vmatpush1.msra.mxu0 0.0
  %233 = vmatprep.subr.mxu0 0.0
  %234 = vmatpush1.msra.mxu0 0.0
  %235 = vmatprep.subr.mxu0 0.0
  %236 = vmatpush1.msra.mxu0 0.0
  %237 = vmatprep.subr.mxu0 0.0
  %238 = vmatpush1.msra.mxu0 0.0
  %239 = vmatprep.subr.mxu0 0.0
  %240 = vmatpush1.msra.mxu0 0.0
  %241 = vmatprep.subr.mxu0 0.0
  %242 = vmatpush1.msra.mxu0 0.0
  %243 = vmatprep.subr.mxu0 0.0
  %244 = vmatpush1.msra.mxu0 0.0
  %245 = vmatprep.subr.mxu0 0.0
  %246 = vmatpush1.msra.mxu0 0.0
  %247 = vmatprep.subr.mxu0 0.0
  %248 = vmatpush1.msra.mxu0 0.0
  %249 = vmatprep.subr.mxu0 0.0
  %250 = vmatpush1.msra.mxu0 0.0
  %251 = vmatprep.subr.mxu0 0.0
  %252 = vmatpush1.msra.mxu0 0.0
  %253 = vmatprep.subr.mxu0 0.0
  %254 = vmatpush1.msra.mxu0 0.0
  %255 = vmatprep.subr.mxu0 0.0
  %256 = vmatpush1.msra.mxu0 0.0
  %257 = vmatprep.subr.mxu0 0.0
  %258 = vmatpush1.msra.mxu0 0.0
  %259 = vmatprep.subr.mxu0 0.0
  %260 = vmatpush1.msra.mxu0 0.0
  %261 = vmatprep.subr.mxu0 0.0
  %262 = vmatpush1.msra.mxu0 0.0
  %263 = vmatprep.subr.mxu0 0.0
  %264 = vmatpush1.msra.mxu0 0.0
  %265 = vmatprep.mubr.f32.mxu0 0.0
  %266 = vmatmul.mubr.f32.gmra.mrb[0].mxu0 %v199
  %v267 = vpop.f32.mrb[0].mxu0
  %v268 = vadd.f32 %v106, %v267
  %v269 = vpop.f32.mrb[0].mxu0
  %270 = vdwg.mxu0
  %v271 = vadd.f32 %v268, %v25
  %v272 = vtanh.pop %v271
  %273 = vst.msk [vmem:[%s5] sm:$0xff] %vm35, %v272
  %v274 = vld [vmem:[%s3] sm:$0xff]
  %v275 = vld [vmem:[%s3 + $0x8] sm:$0xff]
  %v276 = vld [vmem:[%s3 + $0x10] sm:$0xff]
  %v277 = vld [vmem:[%s3 + $0x18] sm:$0xff]
  %v278 = vld [vmem:[%s3 + $0x20] sm:$0xff]
  %v279 = vld [vmem:[%s3 + $0x28] sm:$0xff]
  %v280 = vld [vmem:[%s3 + $0x30] sm:$0xff]
  %v281 = vld [vmem:[%s3 + $0x38] sm:$0xff]
  %v283 = vsel %vm35, %v272, 0
  %285 = vmatprep.subr.mxu0 0.0
  %286 = vmatpush1.msra.mxu0 %v274
  %287 = vmatprep.subr.mxu0 0.0
  %288 = vmatpush1.msra.mxu0 %v275
  %289 = vmatprep.subr.mxu0 0.0
  %290 = vmatpush1.msra.mxu0 %v276
  %291 = vmatprep.subr.mxu0 0.0
  %292 = vmatpush1.msra.mxu0 %v277
  %293 = vmatprep.subr.mxu0 0.0
  %294 = vmatpush1.msra.mxu0 %v278
  %295 = vmatprep.subr.mxu0 0.0
  %296 = vmatpush1.msra.mxu0 %v279
  %297 = vmatprep.subr.mxu0 0.0
  %298 = vmatpush1.msra.mxu0 %v280
  %299 = vmatprep.subr.mxu0 0.0
  %300 = vmatpush1.msra.mxu0 %v281
  %301 = vmatprep.subr.mxu0 0.0
  %302 = vmatpush1.msra.mxu0 0.0
  %303 = vmatprep.subr.mxu0 0.0
  %304 = vmatpush1.msra.mxu0 0.0
  %305 = vmatprep.subr.mxu0 0.0
  %306 = vmatpush1.msra.mxu0 0.0
  %307 = vmatprep.subr.mxu0 0.0
  %308 = vmatpush1.msra.mxu0 0.0
  %309 = vmatprep.subr.mxu0 0.0
  %310 = vmatpush1.msra.mxu0 0.0
  %311 = vmatprep.subr.mxu0 0.0
  %312 = vmatpush1.msra.mxu0 0.0
  %313 = vmatprep.subr.mxu0 0.0
  %314 = vmatpush1.msra.mxu0 0.0
  %315 = vmatprep.subr.mxu0 0.0
  %316 = vmatpush1.msra.mxu0 0.0
  %317 = vmatprep.subr.mxu0 0.0
  %318 = vmatpush1.msra.mxu0 0.0
  %319 = vmatprep.subr.mxu0 0.0
  %320 = vmatpush1.msra.mxu0 0.0
  %321 = vmatprep.subr.mxu0 0.0
  %322 = vmatpush1.msra.mxu0 0.0
  %323 = vmatprep.subr.mxu0 0.0
  %324 = vmatpush1.msra.mxu0 0.0
  %325 = vmatprep.subr.mxu0 0.0
  %326 = vmatpush1.msra.mxu0 0.0
  %327 = vmatprep.subr.mxu0 0.0
  %328 = vmatpush1.msra.mxu0 0.0
  %329 = vmatprep.subr.mxu0 0.0
  %330 = vmatpush1.msra.mxu0 0.0
  %331 = vmatprep.subr.mxu0 0.0
  %332 = vmatpush1.msra.mxu0 0.0
  %333 = vmatprep.subr.mxu0 0.0
  %334 = vmatpush1.msra.mxu0 0.0
  %335 = vmatprep.subr.mxu0 0.0
  %336 = vmatpush1.msra.mxu0 0.0
  %337 = vmatprep.subr.mxu0 0.0
  %338 = vmatpush1.msra.mxu0 0.0
  %339 = vmatprep.subr.mxu0 0.0
  %340 = vmatpush1.msra.mxu0 0.0
  %341 = vmatprep.subr.mxu0 0.0
  %342 = vmatpush1.msra.mxu0 0.0
  %343 = vmatprep.subr.mxu0 0.0
  %344 = vmatpush1.msra.mxu0 0.0
  %345 = vmatprep.subr.mxu0 0.0
  %346 = vmatpush1.msra.mxu0 0.0
  %347 = vmatprep.subr.mxu0 0.0
  %348 = vmatpush1.msra.mxu0 0.0
  %349 = vmatprep.mubr.f32.mxu0 0.0
  %350 = vmatmul.mubr.f32.gmra.mrb[0].mxu0 %v283
  %v351 = vpop.f32.mrb[0].mxu0
  %v352 = vadd.f32 0.0, %v351
  %v353 = vpop.f32.mrb[0].mxu0
  %354 = vdwg.mxu0
  %s355 = scalar_lea.vmem %s0, 8
  %v356 = vld [vmem:[%s355] sm:$0xff]
  %v357 = vld [vmem:[%s1] sm:$0xff]
  %v358 = vld [vmem:[%s1 + $0x8] sm:$0xff]
  %v359 = vld [vmem:[%s1 + $0x10] sm:$0xff]
  %v360 = vld [vmem:[%s1 + $0x18] sm:$0xff]
  %v361 = vld [vmem:[%s1 + $0x20] sm:$0xff]
  %v362 = vld [vmem:[%s1 + $0x28] sm:$0xff]
  %v363 = vld [vmem:[%s1 + $0x30] sm:$0xff]
  %v364 = vld [vmem:[%s1 + $0x38] sm:$0xff]
  %365 = vmatprep.subr.mxu0 0.0
  %366 = vmatpush1.msra.mxu0 %v357
  %367 = vmatprep.subr.mxu0 0.0
  %368 = vmatpush1.msra.mxu0 %v358
  %369 = vmatprep.subr.mxu0 0.0
  %370 = vmatpush1.msra.mxu0 %v359
  %371 = vmatprep.subr.mxu0 0.0
  %372 = vmatpush1.msra.mxu0 %v360
  %373 = vmatprep.subr.mxu0 0.0
  %374 = vmatpush1.msra.mxu0 %v361
  %375 = vmatprep.subr.mxu0 0.0
  %376 = vmatpush1.msra.mxu0 %v362
  %377 = vmatprep.subr.mxu0 0.0
  %378 = vmatpush1.msra.mxu0 %v363
  %379 = vmatprep.subr.mxu0 0.0
  %380 = vmatpush1.msra.mxu0 %v364
  %381 = vmatprep.subr.mxu0 0.0
  %382 = vmatpush1.msra.mxu0 0.0
  %383 = vmatprep.subr.mxu0 0.0
  %384 = vmatpush1.msra.mxu0 0.0
  %385 = vmatprep.subr.mxu0 0.0
  %386 = vmatpush1.msra.mxu0 0.0
  %387 = vmatprep.subr.mxu0 0.0
  %388 = vmatpush1.msra.mxu0 0.0
  %389 = vmatprep.subr.mxu0 0.0
  %390 = vmatpush1.msra.mxu0 0.0
  %391 = vmatprep.subr.mxu0 0.0
  %392 = vmatpush1.msra.mxu0 0.0
  %393 = vmatprep.subr.mxu0 0.0
  %394 = vmatpush1.msra.mxu0 0.0
  %395 = vmatprep.subr.mxu0 0.0
  %396 = vmatpush1.msra.mxu0 0.0
  %397 = vmatprep.subr.mxu0 0.0
  %398 = vmatpush1.msra.mxu0 0.0
  %399 = vmatprep.subr.mxu0 0.0
  %400 = vmatpush1.msra.mxu0 0.0
  %401 = vmatprep.subr.mxu0 0.0
  %402 = vmatpush1.msra.mxu0 0.0
  %403 = vmatprep.subr.mxu0 0.0
  %404 = vmatpush1.msra.mxu0 0.0
  %405 = vmatprep.subr.mxu0 0.0
  %406 = vmatpush1.msra.mxu0 0.0
  %407 = vmatprep.subr.mxu0 0.0
  %408 = vmatpush1.msra.mxu0 0.0
  %409 = vmatprep.subr.mxu0 0.0
  %410 = vmatpush1.msra.mxu0 0.0
  %411 = vmatprep.subr.mxu0 0.0
  %412 = vmatpush1.msra.mxu0 0.0
  %413 = vmatprep.subr.mxu0 0.0
  %414 = vmatpush1.msra.mxu0 0.0
  %415 = vmatprep.subr.mxu0 0.0
  %416 = vmatpush1.msra.mxu0 0.0
  %417 = vmatprep.subr.mxu0 0.0
  %418 = vmatpush1.msra.mxu0 0.0
  %419 = vmatprep.subr.mxu0 0.0
  %420 = vmatpush1.msra.mxu0 0.0
  %421 = vmatprep.subr.mxu0 0.0
  %422 = vmatpush1.msra.mxu0 0.0
  %423 = vmatprep.subr.mxu0 0.0
  %424 = vmatpush1.msra.mxu0 0.0
  %425 = vmatprep.subr.mxu0 0.0
  %426 = vmatpush1.msra.mxu0 0.0
  %427 = vmatprep.subr.mxu0 0.0
  %428 = vmatpush1.msra.mxu0 0.0
  %429 = vmatprep.mubr.f32.mxu0 0.0
  %430 = vmatmul.mubr.f32.gmra.mrb[0].mxu0 %v199
  %v431 = vpop.f32.mrb[0].mxu0
  %v432 = vadd.f32 0.0, %v431
  %v433 = vpop.f32.mrb[0].mxu0
  %434 = vdwg.mxu0
  %v435 = vadd.f32 %v356, %v432
  %v436 = vtanh.pop %v435
  %v437 = vld [vmem:[%s2] sm:$0xff]
  %v438 = vld [vmem:[%s2 + $0x8] sm:$0xff]
  %v439 = vld [vmem:[%s2 + $0x10] sm:$0xff]
  %v440 = vld [vmem:[%s2 + $0x18] sm:$0xff]
  %v441 = vld [vmem:[%s2 + $0x20] sm:$0xff]
  %v442 = vld [vmem:[%s2 + $0x28] sm:$0xff]
  %v443 = vld [vmem:[%s2 + $0x30] sm:$0xff]
  %v444 = vld [vmem:[%s2 + $0x38] sm:$0xff]
  %v446 = vsel %vm35, %v436, 0
  %448 = vmatprep.subr.mxu0 0.0
  %449 = vmatpush1.msra.mxu0 %v437
  %450 = vmatprep.subr.mxu0 0.0
  %451 = vmatpush1.msra.mxu0 %v438
  %452 = vmatprep.subr.mxu0 0.0
  %453 = vmatpush1.msra.mxu0 %v439
  %454 = vmatprep.subr.mxu0 0.0
  %455 = vmatpush1.msra.mxu0 %v440
  %456 = vmatprep.subr.mxu0 0.0
  %457 = vmatpush1.msra.mxu0 %v441
  %458 = vmatprep.subr.mxu0 0.0
  %459 = vmatpush1.msra.mxu0 %v442
  %460 = vmatprep.subr.mxu0 0.0
  %461 = vmatpush1.msra.mxu0 %v443
  %462 = vmatprep.subr.mxu0 0.0
  %463 = vmatpush1.msra.mxu0 %v444
  %464 = vmatprep.subr.mxu0 0.0
  %465 = vmatpush1.msra.mxu0 0.0
  %466 = vmatprep.subr.mxu0 0.0
  %467 = vmatpush1.msra.mxu0 0.0
  %468 = vmatprep.subr.mxu0 0.0
  %469 = vmatpush1.msra.mxu0 0.0
  %470 = vmatprep.subr.mxu0 0.0
  %471 = vmatpush1.msra.mxu0 0.0
  %472 = vmatprep.subr.mxu0 0.0
  %473 = vmatpush1.msra.mxu0 0.0
  %474 = vmatprep.subr.mxu0 0.0
  %475 = vmatpush1.msra.mxu0 0.0
  %476 = vmatprep.subr.mxu0 0.0
  %477 = vmatpush1.msra.mxu0 0.0
  %478 = vmatprep.subr.mxu0 0.0
  %479 = vmatpush1.msra.mxu0 0.0
  %480 = vmatprep.subr.mxu0 0.0
  %481 = vmatpush1.msra.mxu0 0.0
  %482 = vmatprep.subr.mxu0 0.0
  %483 = vmatpush1.msra.mxu0 0.0
  %484 = vmatprep.subr.mxu0 0.0
  %485 = vmatpush1.msra.mxu0 0.0
  %486 = vmatprep.subr.mxu0 0.0
  %487 = vmatpush1.msra.mxu0 0.0
  %488 = vmatprep.subr.mxu0 0.0
  %489 = vmatpush1.msra.mxu0 0.0
  %490 = vmatprep.subr.mxu0 0.0
  %491 = vmatpush1.msra.mxu0 0.0
  %492 = vmatprep.subr.mxu0 0.0
  %493 = vmatpush1.msra.mxu0 0.0
  %494 = vmatprep.subr.mxu0 0.0
  %495 = vmatpush1.msra.mxu0 0.0
  %496 = vmatprep.subr.mxu0 0.0
  %497 = vmatpush1.msra.mxu0 0.0
  %498 = vmatprep.subr.mxu0 0.0
  %499 = vmatpush1.msra.mxu0 0.0
  %500 = vmatprep.subr.mxu0 0.0
  %501 = vmatpush1.msra.mxu0 0.0
  %502 = vmatprep.subr.mxu0 0.0
  %503 = vmatpush1.msra.mxu0 0.0
  %504 = vmatprep.subr.mxu0 0.0
  %505 = vmatpush1.msra.mxu0 0.0
  %506 = vmatprep.subr.mxu0 0.0
  %507 = vmatpush1.msra.mxu0 0.0
  %508 = vmatprep.subr.mxu0 0.0
  %509 = vmatpush1.msra.mxu0 0.0
  %510 = vmatprep.subr.mxu0 0.0
  %511 = vmatpush1.msra.mxu0 0.0
  %512 = vmatprep.mubr.f32.mxu0 0.0
  %513 = vmatmul.mubr.f32.gmra.mrb[0].mxu0 %v446
  %v514 = vpop.f32.mrb[0].mxu0
  %v515 = vadd.f32 %v352, %v514
  %v516 = vpop.f32.mrb[0].mxu0
  %517 = vdwg.mxu0
  %v518 = vadd.f32 %v515, %v25
  %v519 = vtanh.pop %v518
  %s520 = scalar_lea.vmem %s5, 8
  %521 = vst.msk [vmem:[%s520] sm:$0xff] %vm35, %v519
  %v522 = vld [vmem:[%s3] sm:$0xff]
  %v523 = vld [vmem:[%s3 + $0x8] sm:$0xff]
  %v524 = vld [vmem:[%s3 + $0x10] sm:$0xff]
  %v525 = vld [vmem:[%s3 + $0x18] sm:$0xff]
  %v526 = vld [vmem:[%s3 + $0x20] sm:$0xff]
  %v527 = vld [vmem:[%s3 + $0x28] sm:$0xff]
  %v528 = vld [vmem:[%s3 + $0x30] sm:$0xff]
  %v529 = vld [vmem:[%s3 + $0x38] sm:$0xff]
  %v531 = vsel %vm35, %v519, 0
  %533 = vmatprep.subr.mxu0 0.0
  %534 = vmatpush1.msra.mxu0 %v522
  %535 = vmatprep.subr.mxu0 0.0
  %536 = vmatpush1.msra.mxu0 %v523
  %537 = vmatprep.subr.mxu0 0.0
  %538 = vmatpush1.msra.mxu0 %v524
  %539 = vmatprep.subr.mxu0 0.0
  %540 = vmatpush1.msra.mxu0 %v525
  %541 = vmatprep.subr.mxu0 0.0
  %542 = vmatpush1.msra.mxu0 %v526
  %543 = vmatprep.subr.mxu0 0.0
  %544 = vmatpush1.msra.mxu0 %v527
  %545 = vmatprep.subr.mxu0 0.0
  %546 = vmatpush1.msra.mxu0 %v528
  %547 = vmatprep.subr.mxu0 0.0
  %548 = vmatpush1.msra.mxu0 %v529
  %549 = vmatprep.subr.mxu0 0.0
  %550 = vmatpush1.msra.mxu0 0.0
  %551 = vmatprep.subr.mxu0 0.0
  %552 = vmatpush1.msra.mxu0 0.0
  %553 = vmatprep.subr.mxu0 0.0
  %554 = vmatpush1.msra.mxu0 0.0
  %555 = vmatprep.subr.mxu0 0.0
  %556 = vmatpush1.msra.mxu0 0.0
  %557 = vmatprep.subr.mxu0 0.0
  %558 = vmatpush1.msra.mxu0 0.0
  %559 = vmatprep.subr.mxu0 0.0
  %560 = vmatpush1.msra.mxu0 0.0
  %561 = vmatprep.subr.mxu0 0.0
  %562 = vmatpush1.msra.mxu0 0.0
  %563 = vmatprep.subr.mxu0 0.0
  %564 = vmatpush1.msra.mxu0 0.0
  %565 = vmatprep.subr.mxu0 0.0
  %566 = vmatpush1.msra.mxu0 0.0
  %567 = vmatprep.subr.mxu0 0.0
  %568 = vmatpush1.msra.mxu0 0.0
  %569 = vmatprep.subr.mxu0 0.0
  %570 = vmatpush1.msra.mxu0 0.0
  %571 = vmatprep.subr.mxu0 0.0
  %572 = vmatpush1.msra.mxu0 0.0
  %573 = vmatprep.subr.mxu0 0.0
  %574 = vmatpush1.msra.mxu0 0.0
  %575 = vmatprep.subr.mxu0 0.0
  %576 = vmatpush1.msra.mxu0 0.0
  %577 = vmatprep.subr.mxu0 0.0
  %578 = vmatpush1.msra.mxu0 0.0
  %579 = vmatprep.subr.mxu0 0.0
  %580 = vmatpush1.msra.mxu0 0.0
  %581 = vmatprep.subr.mxu0 0.0
  %582 = vmatpush1.msra.mxu0 0.0
  %583 = vmatprep.subr.mxu0 0.0
  %584 = vmatpush1.msra.mxu0 0.0
  %585 = vmatprep.subr.mxu0 0.0
  %586 = vmatpush1.msra.mxu0 0.0
  %587 = vmatprep.subr.mxu0 0.0
  %588 = vmatpush1.msra.mxu0 0.0
  %589 = vmatprep.subr.mxu0 0.0
  %590 = vmatpush1.msra.mxu0 0.0
  %591 = vmatprep.subr.mxu0 0.0
  %592 = vmatpush1.msra.mxu0 0.0
  %593 = vmatprep.subr.mxu0 0.0
  %594 = vmatpush1.msra.mxu0 0.0
  %595 = vmatprep.subr.mxu0 0.0
  %596 = vmatpush1.msra.mxu0 0.0
  %597 = vmatprep.mubr.f32.mxu0 0.0
  %598 = vmatmul.mubr.f32.gmra.mrb[0].mxu0 %v531
  %v599 = vpop.f32.mrb[0].mxu0
  %v600 = vadd.f32 0.0, %v599
  %v601 = vpop.f32.mrb[0].mxu0
  %602 = vdwg.mxu0
  %s603 = scalar_lea.vmem %s0, 16
  %v604 = vld [vmem:[%s603] sm:$0xff]
  %v605 = vld [vmem:[%s1] sm:$0xff]
  %v606 = vld [vmem:[%s1 + $0x8] sm:$0xff]
  %v607 = vld [vmem:[%s1 + $0x10] sm:$0xff]
  %v608 = vld [vmem:[%s1 + $0x18] sm:$0xff]
  %v609 = vld [vmem:[%s1 + $0x20] sm:$0xff]
  %v610 = vld [vmem:[%s1 + $0x28] sm:$0xff]
  %v611 = vld [vmem:[%s1 + $0x30] sm:$0xff]
  %v612 = vld [vmem:[%s1 + $0x38] sm:$0xff]
  %613 = vmatprep.subr.mxu0 0.0
  %614 = vmatpush1.msra.mxu0 %v605
  %615 = vmatprep.subr.mxu0 0.0
  %616 = vmatpush1.msra.mxu0 %v606
  %617 = vmatprep.subr.mxu0 0.0
  %618 = vmatpush1.msra.mxu0 %v607
  %619 = vmatprep.subr.mxu0 0.0
  %620 = vmatpush1.msra.mxu0 %v608
  %621 = vmatprep.subr.mxu0 0.0
  %622 = vmatpush1.msra.mxu0 %v609
  %623 = vmatprep.subr.mxu0 0.0
  %624 = vmatpush1.msra.mxu0 %v610
  %625 = vmatprep.subr.mxu0 0.0
  %626 = vmatpush1.msra.mxu0 %v611
  %627 = vmatprep.subr.mxu0 0.0
  %628 = vmatpush1.msra.mxu0 %v612
  %629 = vmatprep.subr.mxu0 0.0
  %630 = vmatpush1.msra.mxu0 0.0
  %631 = vmatprep.subr.mxu0 0.0
  %632 = vmatpush1.msra.mxu0 0.0
  %633 = vmatprep.subr.mxu0 0.0
  %634 = vmatpush1.msra.mxu0 0.0
  %635 = vmatprep.subr.mxu0 0.0
  %636 = vmatpush1.msra.mxu0 0.0
  %637 = vmatprep.subr.mxu0 0.0
  %638 = vmatpush1.msra.mxu0 0.0
  %639 = vmatprep.subr.mxu0 0.0
  %640 = vmatpush1.msra.mxu0 0.0
  %641 = vmatprep.subr.mxu0 0.0
  %642 = vmatpush1.msra.mxu0 0.0
  %643 = vmatprep.subr.mxu0 0.0
  %644 = vmatpush1.msra.mxu0 0.0
  %645 = vmatprep.subr.mxu0 0.0
  %646 = vmatpush1.msra.mxu0 0.0
  %647 = vmatprep.subr.mxu0 0.0
  %648 = vmatpush1.msra.mxu0 0.0
  %649 = vmatprep.subr.mxu0 0.0
  %650 = vmatpush1.msra.mxu0 0.0
  %651 = vmatprep.subr.mxu0 0.0
  %652 = vmatpush1.msra.mxu0 0.0
  %653 = vmatprep.subr.mxu0 0.0
  %654 = vmatpush1.msra.mxu0 0.0
  %655 = vmatprep.subr.mxu0 0.0
  %656 = vmatpush1.msra.mxu0 0.0
  %657 = vmatprep.subr.mxu0 0.0
  %658 = vmatpush1.msra.mxu0 0.0
  %659 = vmatprep.subr.mxu0 0.0
  %660 = vmatpush1.msra.mxu0 0.0
  %661 = vmatprep.subr.mxu0 0.0
  %662 = vmatpush1.msra.mxu0 0.0
  %663 = vmatprep.subr.mxu0 0.0
  %664 = vmatpush1.msra.mxu0 0.0
  %665 = vmatprep.subr.mxu0 0.0
  %666 = vmatpush1.msra.mxu0 0.0
  %667 = vmatprep.subr.mxu0 0.0
  %668 = vmatpush1.msra.mxu0 0.0
  %669 = vmatprep.subr.mxu0 0.0
  %670 = vmatpush1.msra.mxu0 0.0
  %671 = vmatprep.subr.mxu0 0.0
  %672 = vmatpush1.msra.mxu0 0.0
  %673 = vmatprep.subr.mxu0 0.0
  %674 = vmatpush1.msra.mxu0 0.0
  %675 = vmatprep.subr.mxu0 0.0
  %676 = vmatpush1.msra.mxu0 0.0
  %677 = vmatprep.mubr.f32.mxu0 0.0
  %678 = vmatmul.mubr.f32.gmra.mrb[0].mxu0 %v446
  %v679 = vpop.f32.mrb[0].mxu0
  %v680 = vadd.f32 0.0, %v679
  %v681 = vpop.f32.mrb[0].mxu0
  %682 = vdwg.mxu0
  %v683 = vadd.f32 %v604, %v680
  %v684 = vtanh.pop %v683
  %v685 = vld [vmem:[%s2] sm:$0xff]
  %v686 = vld [vmem:[%s2 + $0x8] sm:$0xff]
  %v687 = vld [vmem:[%s2 + $0x10] sm:$0xff]
  %v688 = vld [vmem:[%s2 + $0x18] sm:$0xff]
  %v689 = vld [vmem:[%s2 + $0x20] sm:$0xff]
  %v690 = vld [vmem:[%s2 + $0x28] sm:$0xff]
  %v691 = vld [vmem:[%s2 + $0x30] sm:$0xff]
  %v692 = vld [vmem:[%s2 + $0x38] sm:$0xff]
  %v694 = vsel %vm35, %v684, 0
  %696 = vmatprep.subr.mxu0 0.0
  %697 = vmatpush1.msra.mxu0 %v685
  %698 = vmatprep.subr.mxu0 0.0
  %699 = vmatpush1.msra.mxu0 %v686
  %700 = vmatprep.subr.mxu0 0.0
  %701 = vmatpush1.msra.mxu0 %v687
  %702 = vmatprep.subr.mxu0 0.0
  %703 = vmatpush1.msra.mxu0 %v688
  %704 = vmatprep.subr.mxu0 0.0
  %705 = vmatpush1.msra.mxu0 %v689
  %706 = vmatprep.subr.mxu0 0.0
  %707 = vmatpush1.msra.mxu0 %v690
  %708 = vmatprep.subr.mxu0 0.0
  %709 = vmatpush1.msra.mxu0 %v691
  %710 = vmatprep.subr.mxu0 0.0
  %711 = vmatpush1.msra.mxu0 %v692
  %712 = vmatprep.subr.mxu0 0.0
  %713 = vmatpush1.msra.mxu0 0.0
  %714 = vmatprep.subr.mxu0 0.0
  %715 = vmatpush1.msra.mxu0 0.0
  %716 = vmatprep.subr.mxu0 0.0
  %717 = vmatpush1.msra.mxu0 0.0
  %718 = vmatprep.subr.mxu0 0.0
  %719 = vmatpush1.msra.mxu0 0.0
  %720 = vmatprep.subr.mxu0 0.0
  %721 = vmatpush1.msra.mxu0 0.0
  %722 = vmatprep.subr.mxu0 0.0
  %723 = vmatpush1.msra.mxu0 0.0
  %724 = vmatprep.subr.mxu0 0.0
  %725 = vmatpush1.msra.mxu0 0.0
  %726 = vmatprep.subr.mxu0 0.0
  %727 = vmatpush1.msra.mxu0 0.0
  %728 = vmatprep.subr.mxu0 0.0
  %729 = vmatpush1.msra.mxu0 0.0
  %730 = vmatprep.subr.mxu0 0.0
  %731 = vmatpush1.msra.mxu0 0.0
  %732 = vmatprep.subr.mxu0 0.0
  %733 = vmatpush1.msra.mxu0 0.0
  %734 = vmatprep.subr.mxu0 0.0
  %735 = vmatpush1.msra.mxu0 0.0
  %736 = vmatprep.subr.mxu0 0.0
  %737 = vmatpush1.msra.mxu0 0.0
  %738 = vmatprep.subr.mxu0 0.0
  %739 = vmatpush1.msra.mxu0 0.0
  %740 = vmatprep.subr.mxu0 0.0
  %741 = vmatpush1.msra.mxu0 0.0
  %742 = vmatprep.subr.mxu0 0.0
  %743 = vmatpush1.msra.mxu0 0.0
  %744 = vmatprep.subr.mxu0 0.0
  %745 = vmatpush1.msra.mxu0 0.0
  %746 = vmatprep.subr.mxu0 0.0
  %747 = vmatpush1.msra.mxu0 0.0
  %748 = vmatprep.subr.mxu0 0.0
  %749 = vmatpush1.msra.mxu0 0.0
  %750 = vmatprep.subr.mxu0 0.0
  %751 = vmatpush1.msra.mxu0 0.0
  %752 = vmatprep.subr.mxu0 0.0
  %753 = vmatpush1.msra.mxu0 0.0
  %754 = vmatprep.subr.mxu0 0.0
  %755 = vmatpush1.msra.mxu0 0.0
  %756 = vmatprep.subr.mxu0 0.0
  %757 = vmatpush1.msra.mxu0 0.0
  %758 = vmatprep.subr.mxu0 0.0
  %759 = vmatpush1.msra.mxu0 0.0
  %760 = vmatprep.mubr.f32.mxu0 0.0
  %761 = vmatmul.mubr.f32.gmra.mrb[0].mxu0 %v694
  %v762 = vpop.f32.mrb[0].mxu0
  %v763 = vadd.f32 %v600, %v762
  %v764 = vpop.f32.mrb[0].mxu0
  %765 = vdwg.mxu0
  %v766 = vadd.f32 %v763, %v25
  %v767 = vtanh.pop %v766
  %s768 = scalar_lea.vmem %s5, 16
  %769 = vst.msk [vmem:[%s768] sm:$0xff] %vm35, %v767
  %v770 = vld [vmem:[%s3] sm:$0xff]
  %v771 = vld [vmem:[%s3 + $0x8] sm:$0xff]
  %v772 = vld [vmem:[%s3 + $0x10] sm:$0xff]
  %v773 = vld [vmem:[%s3 + $0x18] sm:$0xff]
  %v774 = vld [vmem:[%s3 + $0x20] sm:$0xff]
  %v775 = vld [vmem:[%s3 + $0x28] sm:$0xff]
  %v776 = vld [vmem:[%s3 + $0x30] sm:$0xff]
  %v777 = vld [vmem:[%s3 + $0x38] sm:$0xff]
  %v779 = vsel %vm35, %v767, 0
  %781 = vmatprep.subr.mxu0 0.0
  %782 = vmatpush1.msra.mxu0 %v770
  %783 = vmatprep.subr.mxu0 0.0
  %784 = vmatpush1.msra.mxu0 %v771
  %785 = vmatprep.subr.mxu0 0.0
  %786 = vmatpush1.msra.mxu0 %v772
  %787 = vmatprep.subr.mxu0 0.0
  %788 = vmatpush1.msra.mxu0 %v773
  %789 = vmatprep.subr.mxu0 0.0
  %790 = vmatpush1.msra.mxu0 %v774
  %791 = vmatprep.subr.mxu0 0.0
  %792 = vmatpush1.msra.mxu0 %v775
  %793 = vmatprep.subr.mxu0 0.0
  %794 = vmatpush1.msra.mxu0 %v776
  %795 = vmatprep.subr.mxu0 0.0
  %796 = vmatpush1.msra.mxu0 %v777
  %797 = vmatprep.subr.mxu0 0.0
  %798 = vmatpush1.msra.mxu0 0.0
  %799 = vmatprep.subr.mxu0 0.0
  %800 = vmatpush1.msra.mxu0 0.0
  %801 = vmatprep.subr.mxu0 0.0
  %802 = vmatpush1.msra.mxu0 0.0
  %803 = vmatprep.subr.mxu0 0.0
  %804 = vmatpush1.msra.mxu0 0.0
  %805 = vmatprep.subr.mxu0 0.0
  %806 = vmatpush1.msra.mxu0 0.0
  %807 = vmatprep.subr.mxu0 0.0
  %808 = vmatpush1.msra.mxu0 0.0
  %809 = vmatprep.subr.mxu0 0.0
  %810 = vmatpush1.msra.mxu0 0.0
  %811 = vmatprep.subr.mxu0 0.0
  %812 = vmatpush1.msra.mxu0 0.0
  %813 = vmatprep.subr.mxu0 0.0
  %814 = vmatpush1.msra.mxu0 0.0
  %815 = vmatprep.subr.mxu0 0.0
  %816 = vmatpush1.msra.mxu0 0.0
  %817 = vmatprep.subr.mxu0 0.0
  %818 = vmatpush1.msra.mxu0 0.0
  %819 = vmatprep.subr.mxu0 0.0
  %820 = vmatpush1.msra.mxu0 0.0
  %821 = vmatprep.subr.mxu0 0.0
  %822 = vmatpush1.msra.mxu0 0.0
  %823 = vmatprep.subr.mxu0 0.0
  %824 = vmatpush1.msra.mxu0 0.0
  %825 = vmatprep.subr.mxu0 0.0
  %826 = vmatpush1.msra.mxu0 0.0
  %827 = vmatprep.subr.mxu0 0.0
  %828 = vmatpush1.msra.mxu0 0.0
  %829 = vmatprep.subr.mxu0 0.0
  %830 = vmatpush1.msra.mxu0 0.0
  %831 = vmatprep.subr.mxu0 0.0
  %832 = vmatpush1.msra.mxu0 0.0
  %833 = vmatprep.subr.mxu0 0.0
  %834 = vmatpush1.msra.mxu0 0.0
  %835 = vmatprep.subr.mxu0 0.0
  %836 = vmatpush1.msra.mxu0 0.0
  %837 = vmatprep.subr.mxu0 0.0
  %838 = vmatpush1.msra.mxu0 0.0
  %839 = vmatprep.subr.mxu0 0.0
  %840 = vmatpush1.msra.mxu0 0.0
  %841 = vmatprep.subr.mxu0 0.0
  %842 = vmatpush1.msra.mxu0 0.0
  %843 = vmatprep.subr.mxu0 0.0
  %844 = vmatpush1.msra.mxu0 0.0
  %845 = vmatprep.mubr.f32.mxu0 0.0
  %846 = vmatmul.mubr.f32.gmra.mrb[0].mxu0 %v779
  %v847 = vpop.f32.mrb[0].mxu0
  %v848 = vadd.f32 0.0, %v847
  %v849 = vpop.f32.mrb[0].mxu0
  %850 = vdwg.mxu0
  %s851 = scalar_lea.vmem %s0, 24
  %v852 = vld [vmem:[%s851] sm:$0xff]
  %v853 = vld [vmem:[%s1] sm:$0xff]
  %v854 = vld [vmem:[%s1 + $0x8] sm:$0xff]
  %v855 = vld [vmem:[%s1 + $0x10] sm:$0xff]
  %v856 = vld [vmem:[%s1 + $0x18] sm:$0xff]
  %v857 = vld [vmem:[%s1 + $0x20] sm:$0xff]
  %v858 = vld [vmem:[%s1 + $0x28] sm:$0xff]
  %v859 = vld [vmem:[%s1 + $0x30] sm:$0xff]
  %v860 = vld [vmem:[%s1 + $0x38] sm:$0xff]
  %861 = vmatprep.subr.mxu0 0.0
  %862 = vmatpush1.msra.mxu0 %v853
  %863 = vmatprep.subr.mxu0 0.0
  %864 = vmatpush1.msra.mxu0 %v854
  %865 = vmatprep.subr.mxu0 0.0
  %866 = vmatpush1.msra.mxu0 %v855
  %867 = vmatprep.subr.mxu0 0.0
  %868 = vmatpush1.msra.mxu0 %v856
  %869 = vmatprep.subr.mxu0 0.0
  %870 = vmatpush1.msra.mxu0 %v857
  %871 = vmatprep.subr.mxu0 0.0
  %872 = vmatpush1.msra.mxu0 %v858
  %873 = vmatprep.subr.mxu0 0.0
  %874 = vmatpush1.msra.mxu0 %v859
  %875 = vmatprep.subr.mxu0 0.0
  %876 = vmatpush1.msra.mxu0 %v860
  %877 = vmatprep.subr.mxu0 0.0
  %878 = vmatpush1.msra.mxu0 0.0
  %879 = vmatprep.subr.mxu0 0.0
  %880 = vmatpush1.msra.mxu0 0.0
  %881 = vmatprep.subr.mxu0 0.0
  %882 = vmatpush1.msra.mxu0 0.0
  %883 = vmatprep.subr.mxu0 0.0
  %884 = vmatpush1.msra.mxu0 0.0
  %885 = vmatprep.subr.mxu0 0.0
  %886 = vmatpush1.msra.mxu0 0.0
  %887 = vmatprep.subr.mxu0 0.0
  %888 = vmatpush1.msra.mxu0 0.0
  %889 = vmatprep.subr.mxu0 0.0
  %890 = vmatpush1.msra.mxu0 0.0
  %891 = vmatprep.subr.mxu0 0.0
  %892 = vmatpush1.msra.mxu0 0.0
  %893 = vmatprep.subr.mxu0 0.0
  %894 = vmatpush1.msra.mxu0 0.0
  %895 = vmatprep.subr.mxu0 0.0
  %896 = vmatpush1.msra.mxu0 0.0
  %897 = vmatprep.subr.mxu0 0.0
  %898 = vmatpush1.msra.mxu0 0.0
  %899 = vmatprep.subr.mxu0 0.0
  %900 = vmatpush1.msra.mxu0 0.0
  %901 = vmatprep.subr.mxu0 0.0
  %902 = vmatpush1.msra.mxu0 0.0
  %903 = vmatprep.subr.mxu0 0.0
  %904 = vmatpush1.msra.mxu0 0.0
  %905 = vmatprep.subr.mxu0 0.0
  %906 = vmatpush1.msra.mxu0 0.0
  %907 = vmatprep.subr.mxu0 0.0
  %908 = vmatpush1.msra.mxu0 0.0
  %909 = vmatprep.subr.mxu0 0.0
  %910 = vmatpush1.msra.mxu0 0.0
  %911 = vmatprep.subr.mxu0 0.0
  %912 = vmatpush1.msra.mxu0 0.0
  %913 = vmatprep.subr.mxu0 0.0
  %914 = vmatpush1.msra.mxu0 0.0
  %915 = vmatprep.subr.mxu0 0.0
  %916 = vmatpush1.msra.mxu0 0.0
  %917 = vmatprep.subr.mxu0 0.0
  %918 = vmatpush1.msra.mxu0 0.0
  %919 = vmatprep.subr.mxu0 0.0
  %920 = vmatpush1.msra.mxu0 0.0
  %921 = vmatprep.subr.mxu0 0.0
  %922 = vmatpush1.msra.mxu0 0.0
  %923 = vmatprep.subr.mxu0 0.0
  %924 = vmatpush1.msra.mxu0 0.0
  %925 = vmatprep.mubr.f32.mxu0 0.0
  %926 = vmatmul.mubr.f32.gmra.mrb[0].mxu0 %v694
  %v927 = vpop.f32.mrb[0].mxu0
  %v928 = vadd.f32 0.0, %v927
  %v929 = vpop.f32.mrb[0].mxu0
  %930 = vdwg.mxu0
  %v931 = vadd.f32 %v852, %v928
  %v932 = vtanh.pop %v931
  %v933 = vld [vmem:[%s2] sm:$0xff]
  %v934 = vld [vmem:[%s2 + $0x8] sm:$0xff]
  %v935 = vld [vmem:[%s2 + $0x10] sm:$0xff]
  %v936 = vld [vmem:[%s2 + $0x18] sm:$0xff]
  %v937 = vld [vmem:[%s2 + $0x20] sm:$0xff]
  %v938 = vld [vmem:[%s2 + $0x28] sm:$0xff]
  %v939 = vld [vmem:[%s2 + $0x30] sm:$0xff]
  %v940 = vld [vmem:[%s2 + $0x38] sm:$0xff]
  %v942 = vsel %vm35, %v932, 0
  %944 = vmatprep.subr.mxu0 0.0
  %945 = vmatpush1.msra.mxu0 %v933
  %946 = vmatprep.subr.mxu0 0.0
  %947 = vmatpush1.msra.mxu0 %v934
  %948 = vmatprep.subr.mxu0 0.0
  %949 = vmatpush1.msra.mxu0 %v935
  %950 = vmatprep.subr.mxu0 0.0
  %951 = vmatpush1.msra.mxu0 %v936
  %952 = vmatprep.subr.mxu0 0.0
  %953 = vmatpush1.msra.mxu0 %v937
  %954 = vmatprep.subr.mxu0 0.0
  %955 = vmatpush1.msra.mxu0 %v938
  %956 = vmatprep.subr.mxu0 0.0
  %957 = vmatpush1.msra.mxu0 %v939
  %958 = vmatprep.subr.mxu0 0.0
  %959 = vmatpush1.msra.mxu0 %v940
  %960 = vmatprep.subr.mxu0 0.0
  %961 = vmatpush1.msra.mxu0 0.0
  %962 = vmatprep.subr.mxu0 0.0
  %963 = vmatpush1.msra.mxu0 0.0
  %964 = vmatprep.subr.mxu0 0.0
  %965 = vmatpush1.msra.mxu0 0.0
  %966 = vmatprep.subr.mxu0 0.0
  %967 = vmatpush1.msra.mxu0 0.0
  %968 = vmatprep.subr.mxu0 0.0
  %969 = vmatpush1.msra.mxu0 0.0
  %970 = vmatprep.subr.mxu0 0.0
  %971 = vmatpush1.msra.mxu0 0.0
  %972 = vmatprep.subr.mxu0 0.0
  %973 = vmatpush1.msra.mxu0 0.0
  %974 = vmatprep.subr.mxu0 0.0
  %975 = vmatpush1.msra.mxu0 0.0
  %976 = vmatprep.subr.mxu0 0.0
  %977 = vmatpush1.msra.mxu0 0.0
  %978 = vmatprep.subr.mxu0 0.0
  %979 = vmatpush1.msra.mxu0 0.0
  %980 = vmatprep.subr.mxu0 0.0
  %981 = vmatpush1.msra.mxu0 0.0
  %982 = vmatprep.subr.mxu0 0.0
  %983 = vmatpush1.msra.mxu0 0.0
  %984 = vmatprep.subr.mxu0 0.0
  %985 = vmatpush1.msra.mxu0 0.0
  %986 = vmatprep.subr.mxu0 0.0
  %987 = vmatpush1.msra.mxu0 0.0
  %988 = vmatprep.subr.mxu0 0.0
  %989 = vmatpush1.msra.mxu0 0.0
  %990 = vmatprep.subr.mxu0 0.0
  %991 = vmatpush1.msra.mxu0 0.0
  %992 = vmatprep.subr.mxu0 0.0
  %993 = vmatpush1.msra.mxu0 0.0
  %994 = vmatprep.subr.mxu0 0.0
  %995 = vmatpush1.msra.mxu0 0.0
  %996 = vmatprep.subr.mxu0 0.0
  %997 = vmatpush1.msra.mxu0 0.0
  %998 = vmatprep.subr.mxu0 0.0
  %999 = vmatpush1.msra.mxu0 0.0
  %1000 = vmatprep.subr.mxu0 0.0
  %1001 = vmatpush1.msra.mxu0 0.0
  %1002 = vmatprep.subr.mxu0 0.0
  %1003 = vmatpush1.msra.mxu0 0.0
  %1004 = vmatprep.subr.mxu0 0.0
  %1005 = vmatpush1.msra.mxu0 0.0
  %1006 = vmatprep.subr.mxu0 0.0
  %1007 = vmatpush1.msra.mxu0 0.0
  %1008 = vmatprep.mubr.f32.mxu0 0.0
  %1009 = vmatmul.mubr.f32.gmra.mrb[0].mxu0 %v942
  %v1010 = vpop.f32.mrb[0].mxu0
  %v1011 = vadd.f32 %v848, %v1010
  %v1012 = vpop.f32.mrb[0].mxu0
  %1013 = vdwg.mxu0
  %v1014 = vadd.f32 %v1011, %v25
  %v1015 = vtanh.pop %v1014
  %s1016 = scalar_lea.vmem %s5, 24
  %1017 = vst.msk [vmem:[%s1016] sm:$0xff] %vm35, %v1015
  %v1018 = vld [vmem:[%s3] sm:$0xff]
  %v1019 = vld [vmem:[%s3 + $0x8] sm:$0xff]
  %v1020 = vld [vmem:[%s3 + $0x10] sm:$0xff]
  %v1021 = vld [vmem:[%s3 + $0x18] sm:$0xff]
  %v1022 = vld [vmem:[%s3 + $0x20] sm:$0xff]
  %v1023 = vld [vmem:[%s3 + $0x28] sm:$0xff]
  %v1024 = vld [vmem:[%s3 + $0x30] sm:$0xff]
  %v1025 = vld [vmem:[%s3 + $0x38] sm:$0xff]
  %v1027 = vsel %vm35, %v1015, 0
  %1029 = vmatprep.subr.mxu0 0.0
  %1030 = vmatpush1.msra.mxu0 %v1018
  %1031 = vmatprep.subr.mxu0 0.0
  %1032 = vmatpush1.msra.mxu0 %v1019
  %1033 = vmatprep.subr.mxu0 0.0
  %1034 = vmatpush1.msra.mxu0 %v1020
  %1035 = vmatprep.subr.mxu0 0.0
  %1036 = vmatpush1.msra.mxu0 %v1021
  %1037 = vmatprep.subr.mxu0 0.0
  %1038 = vmatpush1.msra.mxu0 %v1022
  %1039 = vmatprep.subr.mxu0 0.0
  %1040 = vmatpush1.msra.mxu0 %v1023
  %1041 = vmatprep.subr.mxu0 0.0
  %1042 = vmatpush1.msra.mxu0 %v1024
  %1043 = vmatprep.subr.mxu0 0.0
  %1044 = vmatpush1.msra.mxu0 %v1025
  %1045 = vmatprep.subr.mxu0 0.0
  %1046 = vmatpush1.msra.mxu0 0.0
  %1047 = vmatprep.subr.mxu0 0.0
  %1048 = vmatpush1.msra.mxu0 0.0
  %1049 = vmatprep.subr.mxu0 0.0
  %1050 = vmatpush1.msra.mxu0 0.0
  %1051 = vmatprep.subr.mxu0 0.0
  %1052 = vmatpush1.msra.mxu0 0.0
  %1053 = vmatprep.subr.mxu0 0.0
  %1054 = vmatpush1.msra.mxu0 0.0
  %1055 = vmatprep.subr.mxu0 0.0
  %1056 = vmatpush1.msra.mxu0 0.0
  %1057 = vmatprep.subr.mxu0 0.0
  %1058 = vmatpush1.msra.mxu0 0.0
  %1059 = vmatprep.subr.mxu0 0.0
  %1060 = vmatpush1.msra.mxu0 0.0
  %1061 = vmatprep.subr.mxu0 0.0
  %1062 = vmatpush1.msra.mxu0 0.0
  %1063 = vmatprep.subr.mxu0 0.0
  %1064 = vmatpush1.msra.mxu0 0.0
  %1065 = vmatprep.subr.mxu0 0.0
  %1066 = vmatpush1.msra.mxu0 0.0
  %1067 = vmatprep.subr.mxu0 0.0
  %1068 = vmatpush1.msra.mxu0 0.0
  %1069 = vmatprep.subr.mxu0 0.0
  %1070 = vmatpush1.msra.mxu0 0.0
  %1071 = vmatprep.subr.mxu0 0.0
  %1072 = vmatpush1.msra.mxu0 0.0
  %1073 = vmatprep.subr.mxu0 0.0
  %1074 = vmatpush1.msra.mxu0 0.0
  %1075 = vmatprep.subr.mxu0 0.0
  %1076 = vmatpush1.msra.mxu0 0.0
  %1077 = vmatprep.subr.mxu0 0.0
  %1078 = vmatpush1.msra.mxu0 0.0
  %1079 = vmatprep.subr.mxu0 0.0
  %1080 = vmatpush1.msra.mxu0 0.0
  %1081 = vmatprep.subr.mxu0 0.0
  %1082 = vmatpush1.msra.mxu0 0.0
  %1083 = vmatprep.subr.mxu0 0.0
  %1084 = vmatpush1.msra.mxu0 0.0
  %1085 = vmatprep.subr.mxu0 0.0
  %1086 = vmatpush1.msra.mxu0 0.0
  %1087 = vmatprep.subr.mxu0 0.0
  %1088 = vmatpush1.msra.mxu0 0.0
  %1089 = vmatprep.subr.mxu0 0.0
  %1090 = vmatpush1.msra.mxu0 0.0
  %1091 = vmatprep.subr.mxu0 0.0
  %1092 = vmatpush1.msra.mxu0 0.0
  %1093 = vmatprep.mubr.f32.mxu0 0.0
  %1094 = vmatmul.mubr.f32.gmra.mrb[0].mxu0 %v1027
  %v1095 = vpop.f32.mrb[0].mxu0
  %v1096 = vadd.f32 0.0, %v1095
  %v1097 = vpop.f32.mrb[0].mxu0
  %1098 = vdwg.mxu0
  %s1099 = scalar_lea.vmem %s0, 32
  %v1100 = vld [vmem:[%s1099] sm:$0xff]
  %v1101 = vld [vmem:[%s1] sm:$0xff]
  %v1102 = vld [vmem:[%s1 + $0x8] sm:$0xff]
  %v1103 = vld [vmem:[%s1 + $0x10] sm:$0xff]
  %v1104 = vld [vmem:[%s1 + $0x18] sm:$0xff]
  %v1105 = vld [vmem:[%s1 + $0x20] sm:$0xff]
  %v1106 = vld [vmem:[%s1 + $0x28] sm:$0xff]
  %v1107 = vld [vmem:[%s1 + $0x30] sm:$0xff]
  %v1108 = vld [vmem:[%s1 + $0x38] sm:$0xff]
  %1109 = vmatprep.subr.mxu0 0.0
  %1110 = vmatpush1.msra.mxu0 %v1101
  %1111 = vmatprep.subr.mxu0 0.0
  %1112 = vmatpush1.msra.mxu0 %v1102
  %1113 = vmatprep.subr.mxu0 0.0
  %1114 = vmatpush1.msra.mxu0 %v1103
  %1115 = vmatprep.subr.mxu0 0.0
  %1116 = vmatpush1.msra.mxu0 %v1104
  %1117 = vmatprep.subr.mxu0 0.0
  %1118 = vmatpush1.msra.mxu0 %v1105
  %1119 = vmatprep.subr.mxu0 0.0
  %1120 = vmatpush1.msra.mxu0 %v1106
  %1121 = vmatprep.subr.mxu0 0.0
  %1122 = vmatpush1.msra.mxu0 %v1107
  %1123 = vmatprep.subr.mxu0 0.0
  %1124 = vmatpush1.msra.mxu0 %v1108
  %1125 = vmatprep.subr.mxu0 0.0
  %1126 = vmatpush1.msra.mxu0 0.0
  %1127 = vmatprep.subr.mxu0 0.0
  %1128 = vmatpush1.msra.mxu0 0.0
  %1129 = vmatprep.subr.mxu0 0.0
  %1130 = vmatpush1.msra.mxu0 0.0
  %1131 = vmatprep.subr.mxu0 0.0
  %1132 = vmatpush1.msra.mxu0 0.0
  %1133 = vmatprep.subr.mxu0 0.0
  %1134 = vmatpush1.msra.mxu0 0.0
  %1135 = vmatprep.subr.mxu0 0.0
  %1136 = vmatpush1.msra.mxu0 0.0
  %1137 = vmatprep.subr.mxu0 0.0
  %1138 = vmatpush1.msra.mxu0 0.0
  %1139 = vmatprep.subr.mxu0 0.0
  %1140 = vmatpush1.msra.mxu0 0.0
  %1141 = vmatprep.subr.mxu0 0.0
  %1142 = vmatpush1.msra.mxu0 0.0
  %1143 = vmatprep.subr.mxu0 0.0
  %1144 = vmatpush1.msra.mxu0 0.0
  %1145 = vmatprep.subr.mxu0 0.0
  %1146 = vmatpush1.msra.mxu0 0.0
  %1147 = vmatprep.subr.mxu0 0.0
  %1148 = vmatpush1.msra.mxu0 0.0
  %1149 = vmatprep.subr.mxu0 0.0
  %1150 = vmatpush1.msra.mxu0 0.0
  %1151 = vmatprep.subr.mxu0 0.0
  %1152 = vmatpush1.msra.mxu0 0.0
  %1153 = vmatprep.subr.mxu0 0.0
  %1154 = vmatpush1.msra.mxu0 0.0
  %1155 = vmatprep.subr.mxu0 0.0
  %1156 = vmatpush1.msra.mxu0 0.0
  %1157 = vmatprep.subr.mxu0 0.0
  %1158 = vmatpush1.msra.mxu0 0.0
  %1159 = vmatprep.subr.mxu0 0.0
  %1160 = vmatpush1.msra.mxu0 0.0
  %1161 = vmatprep.subr.mxu0 0.0
  %1162 = vmatpush1.msra.mxu0 0.0
  %1163 = vmatprep.subr.mxu0 0.0
  %1164 = vmatpush1.msra.mxu0 0.0
  %1165 = vmatprep.subr.mxu0 0.0
  %1166 = vmatpush1.msra.mxu0 0.0
  %1167 = vmatprep.subr.mxu0 0.0
  %1168 = vmatpush1.msra.mxu0 0.0
  %1169 = vmatprep.subr.mxu0 0.0
  %1170 = vmatpush1.msra.mxu0 0.0
  %1171 = vmatprep.subr.mxu0 0.0
  %1172 = vmatpush1.msra.mxu0 0.0
  %1173 = vmatprep.mubr.f32.mxu0 0.0
  %1174 = vmatmul.mubr.f32.gmra.mrb[0].mxu0 %v942
  %v1175 = vpop.f32.mrb[0].mxu0
  %v1176 = vadd.f32 0.0, %v1175
  %v1177 = vpop.f32.mrb[0].mxu0
  %1178 = vdwg.mxu0
  %v1179 = vadd.f32 %v1100, %v1176
  %v1180 = vtanh.pop %v1179
  %v1181 = vld [vmem:[%s2] sm:$0xff]
  %v1182 = vld [vmem:[%s2 + $0x8] sm:$0xff]
  %v1183 = vld [vmem:[%s2 + $0x10] sm:$0xff]
  %v1184 = vld [vmem:[%s2 + $0x18] sm:$0xff]
  %v1185 = vld [vmem:[%s2 + $0x20] sm:$0xff]
  %v1186 = vld [vmem:[%s2 + $0x28] sm:$0xff]
  %v1187 = vld [vmem:[%s2 + $0x30] sm:$0xff]
  %v1188 = vld [vmem:[%s2 + $0x38] sm:$0xff]
  %v1190 = vsel %vm35, %v1180, 0
  %1192 = vmatprep.subr.mxu0 0.0
  %1193 = vmatpush1.msra.mxu0 %v1181
  %1194 = vmatprep.subr.mxu0 0.0
  %1195 = vmatpush1.msra.mxu0 %v1182
  %1196 = vmatprep.subr.mxu0 0.0
  %1197 = vmatpush1.msra.mxu0 %v1183
  %1198 = vmatprep.subr.mxu0 0.0
  %1199 = vmatpush1.msra.mxu0 %v1184
  %1200 = vmatprep.subr.mxu0 0.0
  %1201 = vmatpush1.msra.mxu0 %v1185
  %1202 = vmatprep.subr.mxu0 0.0
  %1203 = vmatpush1.msra.mxu0 %v1186
  %1204 = vmatprep.subr.mxu0 0.0
  %1205 = vmatpush1.msra.mxu0 %v1187
  %1206 = vmatprep.subr.mxu0 0.0
  %1207 = vmatpush1.msra.mxu0 %v1188
  %1208 = vmatprep.subr.mxu0 0.0
  %1209 = vmatpush1.msra.mxu0 0.0
  %1210 = vmatprep.subr.mxu0 0.0
  %1211 = vmatpush1.msra.mxu0 0.0
  %1212 = vmatprep.subr.mxu0 0.0
  %1213 = vmatpush1.msra.mxu0 0.0
  %1214 = vmatprep.subr.mxu0 0.0
  %1215 = vmatpush1.msra.mxu0 0.0
  %1216 = vmatprep.subr.mxu0 0.0
  %1217 = vmatpush1.msra.mxu0 0.0
  %1218 = vmatprep.subr.mxu0 0.0
  %1219 = vmatpush1.msra.mxu0 0.0
  %1220 = vmatprep.subr.mxu0 0.0
  %1221 = vmatpush1.msra.mxu0 0.0
  %1222 = vmatprep.subr.mxu0 0.0
  %1223 = vmatpush1.msra.mxu0 0.0
  %1224 = vmatprep.subr.mxu0 0.0
  %1225 = vmatpush1.msra.mxu0 0.0
  %1226 = vmatprep.subr.mxu0 0.0
  %1227 = vmatpush1.msra.mxu0 0.0
  %1228 = vmatprep.subr.mxu0 0.0
  %1229 = vmatpush1.msra.mxu0 0.0
  %1230 = vmatprep.subr.mxu0 0.0
  %1231 = vmatpush1.msra.mxu0 0.0
  %1232 = vmatprep.subr.mxu0 0.0
  %1233 = vmatpush1.msra.mxu0 0.0
  %1234 = vmatprep.subr.mxu0 0.0
  %1235 = vmatpush1.msra.mxu0 0.0
  %1236 = vmatprep.subr.mxu0 0.0
  %1237 = vmatpush1.msra.mxu0 0.0
  %1238 = vmatprep.subr.mxu0 0.0
  %1239 = vmatpush1.msra.mxu0 0.0
  %1240 = vmatprep.subr.mxu0 0.0
  %1241 = vmatpush1.msra.mxu0 0.0
  %1242 = vmatprep.subr.mxu0 0.0
  %1243 = vmatpush1.msra.mxu0 0.0
  %1244 = vmatprep.subr.mxu0 0.0
  %1245 = vmatpush1.msra.mxu0 0.0
  %1246 = vmatprep.subr.mxu0 0.0
  %1247 = vmatpush1.msra.mxu0 0.0
  %1248 = vmatprep.subr.mxu0 0.0
  %1249 = vmatpush1.msra.mxu0 0.0
  %1250 = vmatprep.subr.mxu0 0.0
  %1251 = vmatpush1.msra.mxu0 0.0
  %1252 = vmatprep.subr.mxu0 0.0
  %1253 = vmatpush1.msra.mxu0 0.0
  %1254 = vmatprep.subr.mxu0 0.0
  %1255 = vmatpush1.msra.mxu0 0.0
  %1256 = vmatprep.mubr.f32.mxu0 0.0
  %1257 = vmatmul.mubr.f32.gmra.mrb[0].mxu0 %v1190
  %v1258 = vpop.f32.mrb[0].mxu0
  %v1259 = vadd.f32 %v1096, %v1258
  %v1260 = vpop.f32.mrb[0].mxu0
  %1261 = vdwg.mxu0
  %v1262 = vadd.f32 %v1259, %v25
  %v1263 = vtanh.pop %v1262
  %s1264 = scalar_lea.vmem %s5, 32
  %1265 = vst.msk [vmem:[%s1264] sm:$0xff] %vm35, %v1263
  %v1266 = vld [vmem:[%s3] sm:$0xff]
  %v1267 = vld [vmem:[%s3 + $0x8] sm:$0xff]
  %v1268 = vld [vmem:[%s3 + $0x10] sm:$0xff]
  %v1269 = vld [vmem:[%s3 + $0x18] sm:$0xff]
  %v1270 = vld [vmem:[%s3 + $0x20] sm:$0xff]
  %v1271 = vld [vmem:[%s3 + $0x28] sm:$0xff]
  %v1272 = vld [vmem:[%s3 + $0x30] sm:$0xff]
  %v1273 = vld [vmem:[%s3 + $0x38] sm:$0xff]
  %v1275 = vsel %vm35, %v1263, 0
  %1277 = vmatprep.subr.mxu0 0.0
  %1278 = vmatpush1.msra.mxu0 %v1266
  %1279 = vmatprep.subr.mxu0 0.0
  %1280 = vmatpush1.msra.mxu0 %v1267
  %1281 = vmatprep.subr.mxu0 0.0
  %1282 = vmatpush1.msra.mxu0 %v1268
  %1283 = vmatprep.subr.mxu0 0.0
  %1284 = vmatpush1.msra.mxu0 %v1269
  %1285 = vmatprep.subr.mxu0 0.0
  %1286 = vmatpush1.msra.mxu0 %v1270
  %1287 = vmatprep.subr.mxu0 0.0
  %1288 = vmatpush1.msra.mxu0 %v1271
  %1289 = vmatprep.subr.mxu0 0.0
  %1290 = vmatpush1.msra.mxu0 %v1272
  %1291 = vmatprep.subr.mxu0 0.0
  %1292 = vmatpush1.msra.mxu0 %v1273
  %1293 = vmatprep.subr.mxu0 0.0
  %1294 = vmatpush1.msra.mxu0 0.0
  %1295 = vmatprep.subr.mxu0 0.0
  %1296 = vmatpush1.msra.mxu0 0.0
  %1297 = vmatprep.subr.mxu0 0.0
  %1298 = vmatpush1.msra.mxu0 0.0
  %1299 = vmatprep.subr.mxu0 0.0
  %1300 = vmatpush1.msra.mxu0 0.0
  %1301 = vmatprep.subr.mxu0 0.0
  %1302 = vmatpush1.msra.mxu0 0.0
  %1303 = vmatprep.subr.mxu0 0.0
  %1304 = vmatpush1.msra.mxu0 0.0
  %1305 = vmatprep.subr.mxu0 0.0
  %1306 = vmatpush1.msra.mxu0 0.0
  %1307 = vmatprep.subr.mxu0 0.0
  %1308 = vmatpush1.msra.mxu0 0.0
  %1309 = vmatprep.subr.mxu0 0.0
  %1310 = vmatpush1.msra.mxu0 0.0
  %1311 = vmatprep.subr.mxu0 0.0
  %1312 = vmatpush1.msra.mxu0 0.0
  %1313 = vmatprep.subr.mxu0 0.0
  %1314 = vmatpush1.msra.mxu0 0.0
  %1315 = vmatprep.subr.mxu0 0.0
  %1316 = vmatpush1.msra.mxu0 0.0
  %1317 = vmatprep.subr.mxu0 0.0
  %1318 = vmatpush1.msra.mxu0 0.0
  %1319 = vmatprep.subr.mxu0 0.0
  %1320 = vmatpush1.msra.mxu0 0.0
  %1321 = vmatprep.subr.mxu0 0.0
  %1322 = vmatpush1.msra.mxu0 0.0
  %1323 = vmatprep.subr.mxu0 0.0
  %1324 = vmatpush1.msra.mxu0 0.0
  %1325 = vmatprep.subr.mxu0 0.0
  %1326 = vmatpush1.msra.mxu0 0.0
  %1327 = vmatprep.subr.mxu0 0.0
  %1328 = vmatpush1.msra.mxu0 0.0
  %1329 = vmatprep.subr.mxu0 0.0
  %1330 = vmatpush1.msra.mxu0 0.0
  %1331 = vmatprep.subr.mxu0 0.0
  %1332 = vmatpush1.msra.mxu0 0.0
  %1333 = vmatprep.subr.mxu0 0.0
  %1334 = vmatpush1.msra.mxu0 0.0
  %1335 = vmatprep.subr.mxu0 0.0
  %1336 = vmatpush1.msra.mxu0 0.0
  %1337 = vmatprep.subr.mxu0 0.0
  %1338 = vmatpush1.msra.mxu0 0.0
  %1339 = vmatprep.subr.mxu0 0.0
  %1340 = vmatpush1.msra.mxu0 0.0
  %1341 = vmatprep.mubr.f32.mxu0 0.0
  %1342 = vmatmul.mubr.f32.gmra.mrb[0].mxu0 %v1275
  %v1343 = vpop.f32.mrb[0].mxu0
  %v1344 = vadd.f32 0.0, %v1343
  %v1345 = vpop.f32.mrb[0].mxu0
  %1346 = vdwg.mxu0
  %s1347 = scalar_lea.vmem %s0, 40
  %v1348 = vld [vmem:[%s1347] sm:$0xff]
  %v1349 = vld [vmem:[%s1] sm:$0xff]
  %v1350 = vld [vmem:[%s1 + $0x8] sm:$0xff]
  %v1351 = vld [vmem:[%s1 + $0x10] sm:$0xff]
  %v1352 = vld [vmem:[%s1 + $0x18] sm:$0xff]
  %v1353 = vld [vmem:[%s1 + $0x20] sm:$0xff]
  %v1354 = vld [vmem:[%s1 + $0x28] sm:$0xff]
  %v1355 = vld [vmem:[%s1 + $0x30] sm:$0xff]
  %v1356 = vld [vmem:[%s1 + $0x38] sm:$0xff]
  %1357 = vmatprep.subr.mxu0 0.0
  %1358 = vmatpush1.msra.mxu0 %v1349
  %1359 = vmatprep.subr.mxu0 0.0
  %1360 = vmatpush1.msra.mxu0 %v1350
  %1361 = vmatprep.subr.mxu0 0.0
  %1362 = vmatpush1.msra.mxu0 %v1351
  %1363 = vmatprep.subr.mxu0 0.0
  %1364 = vmatpush1.msra.mxu0 %v1352
  %1365 = vmatprep.subr.mxu0 0.0
  %1366 = vmatpush1.msra.mxu0 %v1353
  %1367 = vmatprep.subr.mxu0 0.0
  %1368 = vmatpush1.msra.mxu0 %v1354
  %1369 = vmatprep.subr.mxu0 0.0
  %1370 = vmatpush1.msra.mxu0 %v1355
  %1371 = vmatprep.subr.mxu0 0.0
  %1372 = vmatpush1.msra.mxu0 %v1356
  %1373 = vmatprep.subr.mxu0 0.0
  %1374 = vmatpush1.msra.mxu0 0.0
  %1375 = vmatprep.subr.mxu0 0.0
  %1376 = vmatpush1.msra.mxu0 0.0
  %1377 = vmatprep.subr.mxu0 0.0
  %1378 = vmatpush1.msra.mxu0 0.0
  %1379 = vmatprep.subr.mxu0 0.0
  %1380 = vmatpush1.msra.mxu0 0.0
  %1381 = vmatprep.subr.mxu0 0.0
  %1382 = vmatpush1.msra.mxu0 0.0
  %1383 = vmatprep.subr.mxu0 0.0
  %1384 = vmatpush1.msra.mxu0 0.0
  %1385 = vmatprep.subr.mxu0 0.0
  %1386 = vmatpush1.msra.mxu0 0.0
  %1387 = vmatprep.subr.mxu0 0.0
  %1388 = vmatpush1.msra.mxu0 0.0
  %1389 = vmatprep.subr.mxu0 0.0
  %1390 = vmatpush1.msra.mxu0 0.0
  %1391 = vmatprep.subr.mxu0 0.0
  %1392 = vmatpush1.msra.mxu0 0.0
  %1393 = vmatprep.subr.mxu0 0.0
  %1394 = vmatpush1.msra.mxu0 0.0
  %1395 = vmatprep.subr.mxu0 0.0
  %1396 = vmatpush1.msra.mxu0 0.0
  %1397 = vmatprep.subr.mxu0 0.0
  %1398 = vmatpush1.msra.mxu0 0.0
  %1399 = vmatprep.subr.mxu0 0.0
  %1400 = vmatpush1.msra.mxu0 0.0
  %1401 = vmatprep.subr.mxu0 0.0
  %1402 = vmatpush1.msra.mxu0 0.0
  %1403 = vmatprep.subr.mxu0 0.0
  %1404 = vmatpush1.msra.mxu0 0.0
  %1405 = vmatprep.subr.mxu0 0.0
  %1406 = vmatpush1.msra.mxu0 0.0
  %1407 = vmatprep.subr.mxu0 0.0
  %1408 = vmatpush1.msra.mxu0 0.0
  %1409 = vmatprep.subr.mxu0 0.0
  %1410 = vmatpush1.msra.mxu0 0.0
  %1411 = vmatprep.subr.mxu0 0.0
  %1412 = vmatpush1.msra.mxu0 0.0
  %1413 = vmatprep.subr.mxu0 0.0
  %1414 = vmatpush1.msra.mxu0 0.0
  %1415 = vmatprep.subr.mxu0 0.0
  %1416 = vmatpush1.msra.mxu0 0.0
  %1417 = vmatprep.subr.mxu0 0.0
  %1418 = vmatpush1.msra.mxu0 0.0
  %1419 = vmatprep.subr.mxu0 0.0
  %1420 = vmatpush1.msra.mxu0 0.0
  %1421 = vmatprep.mubr.f32.mxu0 0.0
  %1422 = vmatmul.mubr.f32.gmra.mrb[0].mxu0 %v1190
  %v1423 = vpop.f32.mrb[0].mxu0
  %v1424 = vadd.f32 0.0, %v1423
  %v1425 = vpop.f32.mrb[0].mxu0
  %1426 = vdwg.mxu0
  %v1427 = vadd.f32 %v1348, %v1424
  %v1428 = vtanh.pop %v1427
  %v1429 = vld [vmem:[%s2] sm:$0xff]
  %v1430 = vld [vmem:[%s2 + $0x8] sm:$0xff]
  %v1431 = vld [vmem:[%s2 + $0x10] sm:$0xff]
  %v1432 = vld [vmem:[%s2 + $0x18] sm:$0xff]
  %v1433 = vld [vmem:[%s2 + $0x20] sm:$0xff]
  %v1434 = vld [vmem:[%s2 + $0x28] sm:$0xff]
  %v1435 = vld [vmem:[%s2 + $0x30] sm:$0xff]
  %v1436 = vld [vmem:[%s2 + $0x38] sm:$0xff]
  %v1438 = vsel %vm35, %v1428, 0
  %1440 = vmatprep.subr.mxu0 0.0
  %1441 = vmatpush1.msra.mxu0 %v1429
  %1442 = vmatprep.subr.mxu0 0.0
  %1443 = vmatpush1.msra.mxu0 %v1430
  %1444 = vmatprep.subr.mxu0 0.0
  %1445 = vmatpush1.msra.mxu0 %v1431
  %1446 = vmatprep.subr.mxu0 0.0
  %1447 = vmatpush1.msra.mxu0 %v1432
  %1448 = vmatprep.subr.mxu0 0.0
  %1449 = vmatpush1.msra.mxu0 %v1433
  %1450 = vmatprep.subr.mxu0 0.0
  %1451 = vmatpush1.msra.mxu0 %v1434
  %1452 = vmatprep.subr.mxu0 0.0
  %1453 = vmatpush1.msra.mxu0 %v1435
  %1454 = vmatprep.subr.mxu0 0.0
  %1455 = vmatpush1.msra.mxu0 %v1436
  %1456 = vmatprep.subr.mxu0 0.0
  %1457 = vmatpush1.msra.mxu0 0.0
  %1458 = vmatprep.subr.mxu0 0.0
  %1459 = vmatpush1.msra.mxu0 0.0
  %1460 = vmatprep.subr.mxu0 0.0
  %1461 = vmatpush1.msra.mxu0 0.0
  %1462 = vmatprep.subr.mxu0 0.0
  %1463 = vmatpush1.msra.mxu0 0.0
  %1464 = vmatprep.subr.mxu0 0.0
  %1465 = vmatpush1.msra.mxu0 0.0
  %1466 = vmatprep.subr.mxu0 0.0
  %1467 = vmatpush1.msra.mxu0 0.0
  %1468 = vmatprep.subr.mxu0 0.0
  %1469 = vmatpush1.msra.mxu0 0.0
  %1470 = vmatprep.subr.mxu0 0.0
  %1471 = vmatpush1.msra.mxu0 0.0
  %1472 = vmatprep.subr.mxu0 0.0
  %1473 = vmatpush1.msra.mxu0 0.0
  %1474 = vmatprep.subr.mxu0 0.0
  %1475 = vmatpush1.msra.mxu0 0.0
  %1476 = vmatprep.subr.mxu0 0.0
  %1477 = vmatpush1.msra.mxu0 0.0
  %1478 = vmatprep.subr.mxu0 0.0
  %1479 = vmatpush1.msra.mxu0 0.0
  %1480 = vmatprep.subr.mxu0 0.0
  %1481 = vmatpush1.msra.mxu0 0.0
  %1482 = vmatprep.subr.mxu0 0.0
  %1483 = vmatpush1.msra.mxu0 0.0
  %1484 = vmatprep.subr.mxu0 0.0
  %1485 = vmatpush1.msra.mxu0 0.0
  %1486 = vmatprep.subr.mxu0 0.0
  %1487 = vmatpush1.msra.mxu0 0.0
  %1488 = vmatprep.subr.mxu0 0.0
  %1489 = vmatpush1.msra.mxu0 0.0
  %1490 = vmatprep.subr.mxu0 0.0
  %1491 = vmatpush1.msra.mxu0 0.0
  %1492 = vmatprep.subr.mxu0 0.0
  %1493 = vmatpush1.msra.mxu0 0.0
  %1494 = vmatprep.subr.mxu0 0.0
  %1495 = vmatpush1.msra.mxu0 0.0
  %1496 = vmatprep.subr.mxu0 0.0
  %1497 = vmatpush1.msra.mxu0 0.0
  %1498 = vmatprep.subr.mxu0 0.0
  %1499 = vmatpush1.msra.mxu0 0.0
  %1500 = vmatprep.subr.mxu0 0.0
  %1501 = vmatpush1.msra.mxu0 0.0
  %1502 = vmatprep.subr.mxu0 0.0
  %1503 = vmatpush1.msra.mxu0 0.0
  %1504 = vmatprep.mubr.f32.mxu0 0.0
  %1505 = vmatmul.mubr.f32.gmra.mrb[0].mxu0 %v1438
  %v1506 = vpop.f32.mrb[0].mxu0
  %v1507 = vadd.f32 %v1344, %v1506
  %v1508 = vpop.f32.mrb[0].mxu0
  %1509 = vdwg.mxu0
  %v1510 = vadd.f32 %v1507, %v25
  %v1511 = vtanh.pop %v1510
  %s1512 = scalar_lea.vmem %s5, 40
  %1513 = vst.msk [vmem:[%s1512] sm:$0xff] %vm35, %v1511
  %v1514 = vld [vmem:[%s3] sm:$0xff]
  %v1515 = vld [vmem:[%s3 + $0x8] sm:$0xff]
  %v1516 = vld [vmem:[%s3 + $0x10] sm:$0xff]
  %v1517 = vld [vmem:[%s3 + $0x18] sm:$0xff]
  %v1518 = vld [vmem:[%s3 + $0x20] sm:$0xff]
  %v1519 = vld [vmem:[%s3 + $0x28] sm:$0xff]
  %v1520 = vld [vmem:[%s3 + $0x30] sm:$0xff]
  %v1521 = vld [vmem:[%s3 + $0x38] sm:$0xff]
  %v1523 = vsel %vm35, %v1511, 0
  %1525 = vmatprep.subr.mxu0 0.0
  %1526 = vmatpush1.msra.mxu0 %v1514
  %1527 = vmatprep.subr.mxu0 0.0
  %1528 = vmatpush1.msra.mxu0 %v1515
  %1529 = vmatprep.subr.mxu0 0.0
  %1530 = vmatpush1.msra.mxu0 %v1516
  %1531 = vmatprep.subr.mxu0 0.0
  %1532 = vmatpush1.msra.mxu0 %v1517
  %1533 = vmatprep.subr.mxu0 0.0
  %1534 = vmatpush1.msra.mxu0 %v1518
  %1535 = vmatprep.subr.mxu0 0.0
  %1536 = vmatpush1.msra.mxu0 %v1519
  %1537 = vmatprep.subr.mxu0 0.0
  %1538 = vmatpush1.msra.mxu0 %v1520
  %1539 = vmatprep.subr.mxu0 0.0
  %1540 = vmatpush1.msra.mxu0 %v1521
  %1541 = vmatprep.subr.mxu0 0.0
  %1542 = vmatpush1.msra.mxu0 0.0
  %1543 = vmatprep.subr.mxu0 0.0
  %1544 = vmatpush1.msra.mxu0 0.0
  %1545 = vmatprep.subr.mxu0 0.0
  %1546 = vmatpush1.msra.mxu0 0.0
  %1547 = vmatprep.subr.mxu0 0.0
  %1548 = vmatpush1.msra.mxu0 0.0
  %1549 = vmatprep.subr.mxu0 0.0
  %1550 = vmatpush1.msra.mxu0 0.0
  %1551 = vmatprep.subr.mxu0 0.0
  %1552 = vmatpush1.msra.mxu0 0.0
  %1553 = vmatprep.subr.mxu0 0.0
  %1554 = vmatpush1.msra.mxu0 0.0
  %1555 = vmatprep.subr.mxu0 0.0
  %1556 = vmatpush1.msra.mxu0 0.0
  %1557 = vmatprep.subr.mxu0 0.0
  %1558 = vmatpush1.msra.mxu0 0.0
  %1559 = vmatprep.subr.mxu0 0.0
  %1560 = vmatpush1.msra.mxu0 0.0
  %1561 = vmatprep.subr.mxu0 0.0
  %1562 = vmatpush1.msra.mxu0 0.0
  %1563 = vmatprep.subr.mxu0 0.0
  %1564 = vmatpush1.msra.mxu0 0.0
  %1565 = vmatprep.subr.mxu0 0.0
  %1566 = vmatpush1.msra.mxu0 0.0
  %1567 = vmatprep.subr.mxu0 0.0
  %1568 = vmatpush1.msra.mxu0 0.0
  %1569 = vmatprep.subr.mxu0 0.0
  %1570 = vmatpush1.msra.mxu0 0.0
  %1571 = vmatprep.subr.mxu0 0.0
  %1572 = vmatpush1.msra.mxu0 0.0
  %1573 = vmatprep.subr.mxu0 0.0
  %1574 = vmatpush1.msra.mxu0 0.0
  %1575 = vmatprep.subr.mxu0 0.0
  %1576 = vmatpush1.msra.mxu0 0.0
  %1577 = vmatprep.subr.mxu0 0.0
  %1578 = vmatpush1.msra.mxu0 0.0
  %1579 = vmatprep.subr.mxu0 0.0
  %1580 = vmatpush1.msra.mxu0 0.0
  %1581 = vmatprep.subr.mxu0 0.0
  %1582 = vmatpush1.msra.mxu0 0.0
  %1583 = vmatprep.subr.mxu0 0.0
  %1584 = vmatpush1.msra.mxu0 0.0
  %1585 = vmatprep.subr.mxu0 0.0
  %1586 = vmatpush1.msra.mxu0 0.0
  %1587 = vmatprep.subr.mxu0 0.0
  %1588 = vmatpush1.msra.mxu0 0.0
  %1589 = vmatprep.mubr.f32.mxu0 0.0
  %1590 = vmatmul.mubr.f32.gmra.mrb[0].mxu0 %v1523
  %v1591 = vpop.f32.mrb[0].mxu0
  %v1592 = vadd.f32 0.0, %v1591
  %v1593 = vpop.f32.mrb[0].mxu0
  %1594 = vdwg.mxu0
  %s1595 = scalar_lea.vmem %s0, 48
  %v1596 = vld [vmem:[%s1595] sm:$0xff]
  %v1597 = vld [vmem:[%s1] sm:$0xff]
  %v1598 = vld [vmem:[%s1 + $0x8] sm:$0xff]
  %v1599 = vld [vmem:[%s1 + $0x10] sm:$0xff]
  %v1600 = vld [vmem:[%s1 + $0x18] sm:$0xff]
  %v1601 = vld [vmem:[%s1 + $0x20] sm:$0xff]
  %v1602 = vld [vmem:[%s1 + $0x28] sm:$0xff]
  %v1603 = vld [vmem:[%s1 + $0x30] sm:$0xff]
  %v1604 = vld [vmem:[%s1 + $0x38] sm:$0xff]
  %1605 = vmatprep.subr.mxu0 0.0
  %1606 = vmatpush1.msra.mxu0 %v1597
  %1607 = vmatprep.subr.mxu0 0.0
  %1608 = vmatpush1.msra.mxu0 %v1598
  %1609 = vmatprep.subr.mxu0 0.0
  %1610 = vmatpush1.msra.mxu0 %v1599
  %1611 = vmatprep.subr.mxu0 0.0
  %1612 = vmatpush1.msra.mxu0 %v1600
  %1613 = vmatprep.subr.mxu0 0.0
  %1614 = vmatpush1.msra.mxu0 %v1601
  %1615 = vmatprep.subr.mxu0 0.0
  %1616 = vmatpush1.msra.mxu0 %v1602
  %1617 = vmatprep.subr.mxu0 0.0
  %1618 = vmatpush1.msra.mxu0 %v1603
  %1619 = vmatprep.subr.mxu0 0.0
  %1620 = vmatpush1.msra.mxu0 %v1604
  %1621 = vmatprep.subr.mxu0 0.0
  %1622 = vmatpush1.msra.mxu0 0.0
  %1623 = vmatprep.subr.mxu0 0.0
  %1624 = vmatpush1.msra.mxu0 0.0
  %1625 = vmatprep.subr.mxu0 0.0
  %1626 = vmatpush1.msra.mxu0 0.0
  %1627 = vmatprep.subr.mxu0 0.0
  %1628 = vmatpush1.msra.mxu0 0.0
  %1629 = vmatprep.subr.mxu0 0.0
  %1630 = vmatpush1.msra.mxu0 0.0
  %1631 = vmatprep.subr.mxu0 0.0
  %1632 = vmatpush1.msra.mxu0 0.0
  %1633 = vmatprep.subr.mxu0 0.0
  %1634 = vmatpush1.msra.mxu0 0.0
  %1635 = vmatprep.subr.mxu0 0.0
  %1636 = vmatpush1.msra.mxu0 0.0
  %1637 = vmatprep.subr.mxu0 0.0
  %1638 = vmatpush1.msra.mxu0 0.0
  %1639 = vmatprep.subr.mxu0 0.0
  %1640 = vmatpush1.msra.mxu0 0.0
  %1641 = vmatprep.subr.mxu0 0.0
  %1642 = vmatpush1.msra.mxu0 0.0
  %1643 = vmatprep.subr.mxu0 0.0
  %1644 = vmatpush1.msra.mxu0 0.0
  %1645 = vmatprep.subr.mxu0 0.0
  %1646 = vmatpush1.msra.mxu0 0.0
  %1647 = vmatprep.subr.mxu0 0.0
  %1648 = vmatpush1.msra.mxu0 0.0
  %1649 = vmatprep.subr.mxu0 0.0
  %1650 = vmatpush1.msra.mxu0 0.0
  %1651 = vmatprep.subr.mxu0 0.0
  %1652 = vmatpush1.msra.mxu0 0.0
  %1653 = vmatprep.subr.mxu0 0.0
  %1654 = vmatpush1.msra.mxu0 0.0
  %1655 = vmatprep.subr.mxu0 0.0
  %1656 = vmatpush1.msra.mxu0 0.0
  %1657 = vmatprep.subr.mxu0 0.0
  %1658 = vmatpush1.msra.mxu0 0.0
  %1659 = vmatprep.subr.mxu0 0.0
  %1660 = vmatpush1.msra.mxu0 0.0
  %1661 = vmatprep.subr.mxu0 0.0
  %1662 = vmatpush1.msra.mxu0 0.0
  %1663 = vmatprep.subr.mxu0 0.0
  %1664 = vmatpush1.msra.mxu0 0.0
  %1665 = vmatprep.subr.mxu0 0.0
  %1666 = vmatpush1.msra.mxu0 0.0
  %1667 = vmatprep.subr.mxu0 0.0
  %1668 = vmatpush1.msra.mxu0 0.0
  %1669 = vmatprep.mubr.f32.mxu0 0.0
  %1670 = vmatmul.mubr.f32.gmra.mrb[0].mxu0 %v1438
  %v1671 = vpop.f32.mrb[0].mxu0
  %v1672 = vadd.f32 0.0, %v1671
  %v1673 = vpop.f32.mrb[0].mxu0
  %1674 = vdwg.mxu0
  %v1675 = vadd.f32 %v1596, %v1672
  %v1676 = vtanh.pop %v1675
  %v1677 = vld [vmem:[%s2] sm:$0xff]
  %v1678 = vld [vmem:[%s2 + $0x8] sm:$0xff]
  %v1679 = vld [vmem:[%s2 + $0x10] sm:$0xff]
  %v1680 = vld [vmem:[%s2 + $0x18] sm:$0xff]
  %v1681 = vld [vmem:[%s2 + $0x20] sm:$0xff]
  %v1682 = vld [vmem:[%s2 + $0x28] sm:$0xff]
  %v1683 = vld [vmem:[%s2 + $0x30] sm:$0xff]
  %v1684 = vld [vmem:[%s2 + $0x38] sm:$0xff]
  %v1686 = vsel %vm35, %v1676, 0
  %1688 = vmatprep.subr.mxu0 0.0
  %1689 = vmatpush1.msra.mxu0 %v1677
  %1690 = vmatprep.subr.mxu0 0.0
  %1691 = vmatpush1.msra.mxu0 %v1678
  %1692 = vmatprep.subr.mxu0 0.0
  %1693 = vmatpush1.msra.mxu0 %v1679
  %1694 = vmatprep.subr.mxu0 0.0
  %1695 = vmatpush1.msra.mxu0 %v1680
  %1696 = vmatprep.subr.mxu0 0.0
  %1697 = vmatpush1.msra.mxu0 %v1681
  %1698 = vmatprep.subr.mxu0 0.0
  %1699 = vmatpush1.msra.mxu0 %v1682
  %1700 = vmatprep.subr.mxu0 0.0
  %1701 = vmatpush1.msra.mxu0 %v1683
  %1702 = vmatprep.subr.mxu0 0.0
  %1703 = vmatpush1.msra.mxu0 %v1684
  %1704 = vmatprep.subr.mxu0 0.0
  %1705 = vmatpush1.msra.mxu0 0.0
  %1706 = vmatprep.subr.mxu0 0.0
  %1707 = vmatpush1.msra.mxu0 0.0
  %1708 = vmatprep.subr.mxu0 0.0
  %1709 = vmatpush1.msra.mxu0 0.0
  %1710 = vmatprep.subr.mxu0 0.0
  %1711 = vmatpush1.msra.mxu0 0.0
  %1712 = vmatprep.subr.mxu0 0.0
  %1713 = vmatpush1.msra.mxu0 0.0
  %1714 = vmatprep.subr.mxu0 0.0
  %1715 = vmatpush1.msra.mxu0 0.0
  %1716 = vmatprep.subr.mxu0 0.0
  %1717 = vmatpush1.msra.mxu0 0.0
  %1718 = vmatprep.subr.mxu0 0.0
  %1719 = vmatpush1.msra.mxu0 0.0
  %1720 = vmatprep.subr.mxu0 0.0
  %1721 = vmatpush1.msra.mxu0 0.0
  %1722 = vmatprep.subr.mxu0 0.0
  %1723 = vmatpush1.msra.mxu0 0.0
  %1724 = vmatprep.subr.mxu0 0.0
  %1725 = vmatpush1.msra.mxu0 0.0
  %1726 = vmatprep.subr.mxu0 0.0
  %1727 = vmatpush1.msra.mxu0 0.0
  %1728 = vmatprep.subr.mxu0 0.0
  %1729 = vmatpush1.msra.mxu0 0.0
  %1730 = vmatprep.subr.mxu0 0.0
  %1731 = vmatpush1.msra.mxu0 0.0
  %1732 = vmatprep.subr.mxu0 0.0
  %1733 = vmatpush1.msra.mxu0 0.0
  %1734 = vmatprep.subr.mxu0 0.0
  %1735 = vmatpush1.msra.mxu0 0.0
  %1736 = vmatprep.subr.mxu0 0.0
  %1737 = vmatpush1.msra.mxu0 0.0
  %1738 = vmatprep.subr.mxu0 0.0
  %1739 = vmatpush1.msra.mxu0 0.0
  %1740 = vmatprep.subr.mxu0 0.0
  %1741 = vmatpush1.msra.mxu0 0.0
  %1742 = vmatprep.subr.mxu0 0.0
  %1743 = vmatpush1.msra.mxu0 0.0
  %1744 = vmatprep.subr.mxu0 0.0
  %1745 = vmatpush1.msra.mxu0 0.0
  %1746 = vmatprep.subr.mxu0 0.0
  %1747 = vmatpush1.msra.mxu0 0.0
  %1748 = vmatprep.subr.mxu0 0.0
  %1749 = vmatpush1.msra.mxu0 0.0
  %1750 = vmatprep.subr.mxu0 0.0
  %1751 = vmatpush1.msra.mxu0 0.0
  %1752 = vmatprep.mubr.f32.mxu0 0.0
  %1753 = vmatmul.mubr.f32.gmra.mrb[0].mxu0 %v1686
  %v1754 = vpop.f32.mrb[0].mxu0
  %v1755 = vadd.f32 %v1592, %v1754
  %v1756 = vpop.f32.mrb[0].mxu0
  %1757 = vdwg.mxu0
  %v1758 = vadd.f32 %v1755, %v25
  %v1759 = vtanh.pop %v1758
  %s1760 = scalar_lea.vmem %s5, 48
  %1761 = vst.msk [vmem:[%s1760] sm:$0xff] %vm35, %v1759
  %v1762 = vld [vmem:[%s3] sm:$0xff]
  %v1763 = vld [vmem:[%s3 + $0x8] sm:$0xff]
  %v1764 = vld [vmem:[%s3 + $0x10] sm:$0xff]
  %v1765 = vld [vmem:[%s3 + $0x18] sm:$0xff]
  %v1766 = vld [vmem:[%s3 + $0x20] sm:$0xff]
  %v1767 = vld [vmem:[%s3 + $0x28] sm:$0xff]
  %v1768 = vld [vmem:[%s3 + $0x30] sm:$0xff]
  %v1769 = vld [vmem:[%s3 + $0x38] sm:$0xff]
  %v1771 = vsel %vm35, %v1759, 0
  %1773 = vmatprep.subr.mxu0 0.0
  %1774 = vmatpush1.msra.mxu0 %v1762
  %1775 = vmatprep.subr.mxu0 0.0
  %1776 = vmatpush1.msra.mxu0 %v1763
  %1777 = vmatprep.subr.mxu0 0.0
  %1778 = vmatpush1.msra.mxu0 %v1764
  %1779 = vmatprep.subr.mxu0 0.0
  %1780 = vmatpush1.msra.mxu0 %v1765
  %1781 = vmatprep.subr.mxu0 0.0
  %1782 = vmatpush1.msra.mxu0 %v1766
  %1783 = vmatprep.subr.mxu0 0.0
  %1784 = vmatpush1.msra.mxu0 %v1767
  %1785 = vmatprep.subr.mxu0 0.0
  %1786 = vmatpush1.msra.mxu0 %v1768
  %1787 = vmatprep.subr.mxu0 0.0
  %1788 = vmatpush1.msra.mxu0 %v1769
  %1789 = vmatprep.subr.mxu0 0.0
  %1790 = vmatpush1.msra.mxu0 0.0
  %1791 = vmatprep.subr.mxu0 0.0
  %1792 = vmatpush1.msra.mxu0 0.0
  %1793 = vmatprep.subr.mxu0 0.0
  %1794 = vmatpush1.msra.mxu0 0.0
  %1795 = vmatprep.subr.mxu0 0.0
  %1796 = vmatpush1.msra.mxu0 0.0
  %1797 = vmatprep.subr.mxu0 0.0
  %1798 = vmatpush1.msra.mxu0 0.0
  %1799 = vmatprep.subr.mxu0 0.0
  %1800 = vmatpush1.msra.mxu0 0.0
  %1801 = vmatprep.subr.mxu0 0.0
  %1802 = vmatpush1.msra.mxu0 0.0
  %1803 = vmatprep.subr.mxu0 0.0
  %1804 = vmatpush1.msra.mxu0 0.0
  %1805 = vmatprep.subr.mxu0 0.0
  %1806 = vmatpush1.msra.mxu0 0.0
  %1807 = vmatprep.subr.mxu0 0.0
  %1808 = vmatpush1.msra.mxu0 0.0
  %1809 = vmatprep.subr.mxu0 0.0
  %1810 = vmatpush1.msra.mxu0 0.0
  %1811 = vmatprep.subr.mxu0 0.0
  %1812 = vmatpush1.msra.mxu0 0.0
  %1813 = vmatprep.subr.mxu0 0.0
  %1814 = vmatpush1.msra.mxu0 0.0
  %1815 = vmatprep.subr.mxu0 0.0
  %1816 = vmatpush1.msra.mxu0 0.0
  %1817 = vmatprep.subr.mxu0 0.0
  %1818 = vmatpush1.msra.mxu0 0.0
  %1819 = vmatprep.subr.mxu0 0.0
  %1820 = vmatpush1.msra.mxu0 0.0
  %1821 = vmatprep.subr.mxu0 0.0
  %1822 = vmatpush1.msra.mxu0 0.0
  %1823 = vmatprep.subr.mxu0 0.0
  %1824 = vmatpush1.msra.mxu0 0.0
  %1825 = vmatprep.subr.mxu0 0.0
  %1826 = vmatpush1.msra.mxu0 0.0
  %1827 = vmatprep.subr.mxu0 0.0
  %1828 = vmatpush1.msra.mxu0 0.0
  %1829 = vmatprep.subr.mxu0 0.0
  %1830 = vmatpush1.msra.mxu0 0.0
  %1831 = vmatprep.subr.mxu0 0.0
  %1832 = vmatpush1.msra.mxu0 0.0
  %1833 = vmatprep.subr.mxu0 0.0
  %1834 = vmatpush1.msra.mxu0 0.0
  %1835 = vmatprep.subr.mxu0 0.0
  %1836 = vmatpush1.msra.mxu0 0.0
  %1837 = vmatprep.mubr.f32.mxu0 0.0
  %1838 = vmatmul.mubr.f32.gmra.mrb[0].mxu0 %v1771
  %v1839 = vpop.f32.mrb[0].mxu0
  %v1840 = vadd.f32 0.0, %v1839
  %v1841 = vpop.f32.mrb[0].mxu0
  %1842 = vdwg.mxu0
  %s1843 = scalar_lea.vmem %s0, 56
  %v1844 = vld [vmem:[%s1843] sm:$0xff]
  %v1845 = vld [vmem:[%s1] sm:$0xff]
  %v1846 = vld [vmem:[%s1 + $0x8] sm:$0xff]
  %v1847 = vld [vmem:[%s1 + $0x10] sm:$0xff]
  %v1848 = vld [vmem:[%s1 + $0x18] sm:$0xff]
  %v1849 = vld [vmem:[%s1 + $0x20] sm:$0xff]
  %v1850 = vld [vmem:[%s1 + $0x28] sm:$0xff]
  %v1851 = vld [vmem:[%s1 + $0x30] sm:$0xff]
  %v1852 = vld [vmem:[%s1 + $0x38] sm:$0xff]
  %1853 = vmatprep.subr.mxu0 0.0
  %1854 = vmatpush1.msra.mxu0 %v1845
  %1855 = vmatprep.subr.mxu0 0.0
  %1856 = vmatpush1.msra.mxu0 %v1846
  %1857 = vmatprep.subr.mxu0 0.0
  %1858 = vmatpush1.msra.mxu0 %v1847
  %1859 = vmatprep.subr.mxu0 0.0
  %1860 = vmatpush1.msra.mxu0 %v1848
  %1861 = vmatprep.subr.mxu0 0.0
  %1862 = vmatpush1.msra.mxu0 %v1849
  %1863 = vmatprep.subr.mxu0 0.0
  %1864 = vmatpush1.msra.mxu0 %v1850
  %1865 = vmatprep.subr.mxu0 0.0
  %1866 = vmatpush1.msra.mxu0 %v1851
  %1867 = vmatprep.subr.mxu0 0.0
  %1868 = vmatpush1.msra.mxu0 %v1852
  %1869 = vmatprep.subr.mxu0 0.0
  %1870 = vmatpush1.msra.mxu0 0.0
  %1871 = vmatprep.subr.mxu0 0.0
  %1872 = vmatpush1.msra.mxu0 0.0
  %1873 = vmatprep.subr.mxu0 0.0
  %1874 = vmatpush1.msra.mxu0 0.0
  %1875 = vmatprep.subr.mxu0 0.0
  %1876 = vmatpush1.msra.mxu0 0.0
  %1877 = vmatprep.subr.mxu0 0.0
  %1878 = vmatpush1.msra.mxu0 0.0
  %1879 = vmatprep.subr.mxu0 0.0
  %1880 = vmatpush1.msra.mxu0 0.0
  %1881 = vmatprep.subr.mxu0 0.0
  %1882 = vmatpush1.msra.mxu0 0.0
  %1883 = vmatprep.subr.mxu0 0.0
  %1884 = vmatpush1.msra.mxu0 0.0
  %1885 = vmatprep.subr.mxu0 0.0
  %1886 = vmatpush1.msra.mxu0 0.0
  %1887 = vmatprep.subr.mxu0 0.0
  %1888 = vmatpush1.msra.mxu0 0.0
  %1889 = vmatprep.subr.mxu0 0.0
  %1890 = vmatpush1.msra.mxu0 0.0
  %1891 = vmatprep.subr.mxu0 0.0
  %1892 = vmatpush1.msra.mxu0 0.0
  %1893 = vmatprep.subr.mxu0 0.0
  %1894 = vmatpush1.msra.mxu0 0.0
  %1895 = vmatprep.subr.mxu0 0.0
  %1896 = vmatpush1.msra.mxu0 0.0
  %1897 = vmatprep.subr.mxu0 0.0
  %1898 = vmatpush1.msra.mxu0 0.0
  %1899 = vmatprep.subr.mxu0 0.0
  %1900 = vmatpush1.msra.mxu0 0.0
  %1901 = vmatprep.subr.mxu0 0.0
  %1902 = vmatpush1.msra.mxu0 0.0
  %1903 = vmatprep.subr.mxu0 0.0
  %1904 = vmatpush1.msra.mxu0 0.0
  %1905 = vmatprep.subr.mxu0 0.0
  %1906 = vmatpush1.msra.mxu0 0.0
  %1907 = vmatprep.subr.mxu0 0.0
  %1908 = vmatpush1.msra.mxu0 0.0
  %1909 = vmatprep.subr.mxu0 0.0
  %1910 = vmatpush1.msra.mxu0 0.0
  %1911 = vmatprep.subr.mxu0 0.0
  %1912 = vmatpush1.msra.mxu0 0.0
  %1913 = vmatprep.subr.mxu0 0.0
  %1914 = vmatpush1.msra.mxu0 0.0
  %1915 = vmatprep.subr.mxu0 0.0
  %1916 = vmatpush1.msra.mxu0 0.0
  %1917 = vmatprep.mubr.f32.mxu0 0.0
  %1918 = vmatmul.mubr.f32.gmra.mrb[0].mxu0 %v1686
  %v1919 = vpop.f32.mrb[0].mxu0
  %v1920 = vadd.f32 0.0, %v1919
  %v1921 = vpop.f32.mrb[0].mxu0
  %1922 = vdwg.mxu0
  %v1923 = vadd.f32 %v1844, %v1920
  %v1924 = vtanh.pop %v1923
  %v1925 = vld [vmem:[%s2] sm:$0xff]
  %v1926 = vld [vmem:[%s2 + $0x8] sm:$0xff]
  %v1927 = vld [vmem:[%s2 + $0x10] sm:$0xff]
  %v1928 = vld [vmem:[%s2 + $0x18] sm:$0xff]
  %v1929 = vld [vmem:[%s2 + $0x20] sm:$0xff]
  %v1930 = vld [vmem:[%s2 + $0x28] sm:$0xff]
  %v1931 = vld [vmem:[%s2 + $0x30] sm:$0xff]
  %v1932 = vld [vmem:[%s2 + $0x38] sm:$0xff]
  %v1934 = vsel %vm35, %v1924, 0
  %1936 = vmatprep.subr.mxu0 0.0
  %1937 = vmatpush1.msra.mxu0 %v1925
  %1938 = vmatprep.subr.mxu0 0.0
  %1939 = vmatpush1.msra.mxu0 %v1926
  %1940 = vmatprep.subr.mxu0 0.0
  %1941 = vmatpush1.msra.mxu0 %v1927
  %1942 = vmatprep.subr.mxu0 0.0
  %1943 = vmatpush1.msra.mxu0 %v1928
  %1944 = vmatprep.subr.mxu0 0.0
  %1945 = vmatpush1.msra.mxu0 %v1929
  %1946 = vmatprep.subr.mxu0 0.0
  %1947 = vmatpush1.msra.mxu0 %v1930
  %1948 = vmatprep.subr.mxu0 0.0
  %1949 = vmatpush1.msra.mxu0 %v1931
  %1950 = vmatprep.subr.mxu0 0.0
  %1951 = vmatpush1.msra.mxu0 %v1932
  %1952 = vmatprep.subr.mxu0 0.0
  %1953 = vmatpush1.msra.mxu0 0.0
  %1954 = vmatprep.subr.mxu0 0.0
  %1955 = vmatpush1.msra.mxu0 0.0
  %1956 = vmatprep.subr.mxu0 0.0
  %1957 = vmatpush1.msra.mxu0 0.0
  %1958 = vmatprep.subr.mxu0 0.0
  %1959 = vmatpush1.msra.mxu0 0.0
  %1960 = vmatprep.subr.mxu0 0.0
  %1961 = vmatpush1.msra.mxu0 0.0
  %1962 = vmatprep.subr.mxu0 0.0
  %1963 = vmatpush1.msra.mxu0 0.0
  %1964 = vmatprep.subr.mxu0 0.0
  %1965 = vmatpush1.msra.mxu0 0.0
  %1966 = vmatprep.subr.mxu0 0.0
  %1967 = vmatpush1.msra.mxu0 0.0
  %1968 = vmatprep.subr.mxu0 0.0
  %1969 = vmatpush1.msra.mxu0 0.0
  %1970 = vmatprep.subr.mxu0 0.0
  %1971 = vmatpush1.msra.mxu0 0.0
  %1972 = vmatprep.subr.mxu0 0.0
  %1973 = vmatpush1.msra.mxu0 0.0
  %1974 = vmatprep.subr.mxu0 0.0
  %1975 = vmatpush1.msra.mxu0 0.0
  %1976 = vmatprep.subr.mxu0 0.0
  %1977 = vmatpush1.msra.mxu0 0.0
  %1978 = vmatprep.subr.mxu0 0.0
  %1979 = vmatpush1.msra.mxu0 0.0
  %1980 = vmatprep.subr.mxu0 0.0
  %1981 = vmatpush1.msra.mxu0 0.0
  %1982 = vmatprep.subr.mxu0 0.0
  %1983 = vmatpush1.msra.mxu0 0.0
  %1984 = vmatprep.subr.mxu0 0.0
  %1985 = vmatpush1.msra.mxu0 0.0
  %1986 = vmatprep.subr.mxu0 0.0
  %1987 = vmatpush1.msra.mxu0 0.0
  %1988 = vmatprep.subr.mxu0 0.0
  %1989 = vmatpush1.msra.mxu0 0.0
  %1990 = vmatprep.subr.mxu0 0.0
  %1991 = vmatpush1.msra.mxu0 0.0
  %1992 = vmatprep.subr.mxu0 0.0
  %1993 = vmatpush1.msra.mxu0 0.0
  %1994 = vmatprep.subr.mxu0 0.0
  %1995 = vmatpush1.msra.mxu0 0.0
  %1996 = vmatprep.subr.mxu0 0.0
  %1997 = vmatpush1.msra.mxu0 0.0
  %1998 = vmatprep.subr.mxu0 0.0
  %1999 = vmatpush1.msra.mxu0 0.0
  %2000 = vmatprep.mubr.f32.mxu0 0.0
  %2001 = vmatmul.mubr.f32.gmra.mrb[0].mxu0 %v1934
  %v2002 = vpop.f32.mrb[0].mxu0
  %v2003 = vadd.f32 %v1840, %v2002
  %v2004 = vpop.f32.mrb[0].mxu0
  %2005 = vdwg.mxu0
  %v2006 = vadd.f32 %v2003, %v25
  %v2007 = vtanh.pop %v2006
  %s2008 = scalar_lea.vmem %s5, 56
  %2009 = vst.msk [vmem:[%s2008] sm:$0xff] %vm35, %v2007
  // Predicated region
  $region22: #{my_pt_rnn_forward.1} parent=0 // pred_check
    _
  $region23: #{my_pt_rnn_forward.1} parent=0 // pred_check_branch
    %2011 = sbr.rel (0) target = $region25
  $region24: #{my_pt_rnn_forward.1} parent=0 // pred_region
    _
  $region25: #{my_pt_rnn_forward.1} parent=0 // pred_fallthru
    _
  // Predicated region
  $region26: #{my_pt_rnn_forward.1} parent=0 // pred_check
    _
  $region27: #{my_pt_rnn_forward.1} parent=0 // pred_check_branch
    %2013 = sbr.rel (0) target = $region29
  $region28: #{my_pt_rnn_forward.1} parent=0 // pred_region
    _
  $region29: #{my_pt_rnn_forward.1} parent=0 // pred_fallthru
    _

</llo_original>
